<compile_context>
chip_gen: v6e
topology: v6e:2x2x1
jax: 0.10.0
libtpu: 0.0.40
codegen_flags: <defaults>
</compile_context>

<pallas_src>
import math

import jax
import jax.numpy as jnp
from jax import lax
from jax.experimental import pallas as pl
from jax.experimental.pallas import tpu as pltpu

# ---------------- configuration (small, consistent with the module) ----------
NUM_LAYERS = 2
VOCAB = 100
D = 32          # embed_dim
FF = 64         # ff_dim
H = 4           # att_heads
HD = D // H     # head_dim = 8
HALF = HD // 2  # rotate-half offset = 4
S = 8           # seq_len
M = 8           # stm_size
B = 2           # batch
G_SELF = 1      # self-attention GQA groups
G_CROSS = 1     # cross-attention MQA -> 1 KV head
RMS_EPS = float(jnp.finfo(jnp.float32).eps)   # nn.RMSNorm(eps=None) -> dtype eps
SCALE = 1.0 / math.sqrt(HD)

R_ROWS = B * S         # 16 query rows (batch folded into sublanes)
N_SELF = H * B * S     # 64 score columns for self-attention (head, batch, key)
N_MEM = H * M          # 32 score columns for memory cross-attention (head, slot)
SLAB_COLS = 128


# ---------------- slab layouts (shared by host packer and kernel) ------------
def _make_layout(entries):
    offs, r = {}, 0
    for name, nr, nc in entries:
        offs[name] = (r, nr, nc)
        r += nr
    return offs, ((r + 7) // 8) * 8


W_LAYOUT = [
    ("wqkv", D, D + 2 * G_SELF * HD),   # fused self-attn q|k|v projection (32 x 48)
    ("wo", D, D),
    ("cwq", D, D),
    ("cwkv", D, 2 * G_CROSS * HD),      # fused cross-attn k|v projection (32 x 16)
    ("cwo", D, D),
    ("w1v", D, FF),                     # FFN value half
    ("w1g", D, FF),                     # FFN gate half
    ("w2", FF, D),
    ("n1", 1, D), ("bqkv", 1, D + 2 * G_SELF * HD), ("bo", 1, D),
    ("n2", 1, D), ("cbq", 1, D), ("cbkv", 1, 2 * G_CROSS * HD), ("cbo", 1, D),
    ("n3", 1, D), ("b1v", 1, FF), ("b1g", 1, FF), ("b2", 1, D),
]
W_OFFS, W_ROWS = _make_layout(W_LAYOUT)

AUX_LAYOUT = [
    ("cos_q", R_ROWS, D), ("sin_q", R_ROWS, D),
    ("head_mask_self", N_SELF, D), ("blkones_self", N_SELF, N_SELF),
    ("batch_mask", R_ROWS, N_SELF),
    ("head_mask_mem", N_MEM, D), ("blkones_mem", N_MEM, N_MEM),
]
AUX_OFFS, AUX_ROWS = _make_layout(AUX_LAYOUT)


# ---------------- in-kernel helpers (traced inside the Pallas kernel) --------
def _rmsnorm(x, w):
    var = jnp.mean(x * x, axis=-1, keepdims=True)
    return x * lax.rsqrt(var + RMS_EPS) * w


def _rotate_half(x, n_heads):
    # per-head rotate-half via static lane slices + one concat (no MXU, no roll)
    hd = x.shape[1] // n_heads
    half = hd // 2
    parts = []
    for h in range(n_heads):
        seg = x[:, h * hd:(h + 1) * hd]
        parts.append(seg[:, half:])
        parts.append(seg[:, :half])
    return jnp.concatenate(parts, axis=1)


def _rope(x, cos, sin_signed, n_heads):
    # split-half rotary; sign already folded into sin_signed (-sin | +sin per head)
    return x * cos + _rotate_half(x, n_heads) * sin_signed


def _mh_attention(q, k, v, head_mask, blk_ones, bias, extra_mask, wo, bo):
    # q: (R, D); k, v: (Skv, HD) single KV head; head_mask: (H*Skv, D);
    # blk_ones: (H*Skv, H*Skv) block-diagonal ones for per-segment softmax sums.
    kb = jnp.tile(k, (H, H)) * head_mask       # block-diagonal K, (H*Skv, D)
    vb = jnp.tile(v, (H, H)) * head_mask       # block-diagonal V, (H*Skv, D)
    s = lax.dot_general(q, kb, (((1,), (1,)), ((), ())),
                        preferred_element_type=jnp.float32) * SCALE     # (R, H*Skv)
    if bias is not None:
        s = s + bias                           # additive -1e9 key mask
    # NOTE: row max is global across segments (exact per-segment softmax since the
    # shift cancels in the per-segment renormalization; underflow-safe at toy scale).
    m = jnp.max(s, axis=-1, keepdims=True)
    e = jnp.exp(s - m)
    seg = jnp.dot(e, blk_ones, preferred_element_type=jnp.float32)      # per-segment sums
    # fully-masked segments give ~zero sums; the clamp keeps them finite (prob 0).
    p = e * pl.reciprocal(jnp.maximum(seg, 1e-30), approx=True)
    if extra_mask is not None:
        p = p * extra_mask                     # zero out cross-batch segments
    ctx = jnp.dot(p, vb, preferred_element_type=jnp.float32)            # (R, D)
    return jnp.dot(ctx, wo, preferred_element_type=jnp.float32) + bo


# ---------------- the single fused Pallas kernel ------------------------------
def fused_layers_kernel(ids_ref, emb_ref, stm_ref, w_ref, aux_ref, bias_ref,
                        out_ref, x_ref):
    def W(name):
        r0, nr, nc = W_OFFS[name]
        return w_ref[r0:r0 + nr, 0:nc]

    def A(name):
        r0, nr, nc = AUX_OFFS[name]
        return aux_ref[r0:r0 + nr, 0:nc]

    l = pl.program_id(0)

    # ---- embedding lookup (layer 0 only): one-hot iota compare + MXU matmul
    @pl.when(l == 0)
    def _():
        onehot = (ids_ref[...] ==
                  lax.broadcasted_iota(jnp.int32, (R_ROWS, VOCAB), 1)
                  ).astype(jnp.float32)
        x_ref[...] = jnp.dot(onehot, emb_ref[...],
                             preferred_element_type=jnp.float32)

    x = x_ref[...]                                     # (B*S, D) carried activation
    cos_q, sin_q = A("cos_q"), A("sin_q")
    cos_k, sin_k = cos_q[:, :HD], sin_q[:, :HD]
    hm_self, blk_self, bmask = A("head_mask_self"), A("blkones_self"), A("batch_mask")
    hm_mem, blk_mem = A("head_mask_mem"), A("blkones_mem")
    stm_l = stm_ref[...]                               # (M, D), this layer's STM

    # --- self attention (pre-norm, GQA groups=1, RoPE on q and k, key mask) ---
    xn = _rmsnorm(x, W("n1"))
    qkv = jnp.dot(xn, W("wqkv"), preferred_element_type=jnp.float32) + W("bqkv")
    q = _rope(qkv[:, :D], cos_q, sin_q, H)
    k = _rope(qkv[:, D:D + HD], cos_k, sin_k, 1)
    v = qkv[:, D + HD:D + 2 * HD]
    x = x + _mh_attention(q, k, v, hm_self, blk_self, bias_ref[...], bmask,
                          W("wo"), W("bo"))

    # --- memory cross attention (pre-norm, MQA, RoPE only on query, no mask) --
    xn = _rmsnorm(x, W("n2"))
    q = _rope(jnp.dot(xn, W("cwq"), preferred_element_type=jnp.float32) + W("cbq"),
              cos_q, sin_q, H)
    kv = jnp.dot(stm_l, W("cwkv"), preferred_element_type=jnp.float32) + W("cbkv")
    k, v = kv[:, :HD], kv[:, HD:2 * HD]
    x = x + _mh_attention(q, k, v, hm_mem, blk_mem, None, None,
                          W("cwo"), W("cbo"))

    # --- gated feed-forward: value * silu(gate) (val/gate kept as separate blocks)
    xn = _rmsnorm(x, W("n3"))
    val = jnp.dot(xn, W("w1v"), preferred_element_type=jnp.float32) + W("b1v")
    gate = jnp.dot(xn, W("w1g"), preferred_element_type=jnp.float32) + W("b1g")
    x = x + jnp.dot(val * gate * jax.nn.sigmoid(gate), W("w2"),
                    preferred_element_type=jnp.float32) + W("b2")

    x_ref[...] = x                                     # carry to next layer
    out_ref[...] = x                                   # per-layer hidden state


def run_fused(ids, emb, stm_flat, w_slab, aux, bias):
    def const_spec(shape):
        nd = len(shape)
        return pl.BlockSpec(tuple(shape), lambda l, _nd=nd: (0,) * _nd)

    return pl.pallas_call(
        fused_layers_kernel,
        out_shape=jax.ShapeDtypeStruct((NUM_LAYERS * R_ROWS, D), jnp.float32),
        grid=(NUM_LAYERS,),
        in_specs=[
            const_spec(ids.shape),                                # token ids (resident)
            const_spec(emb.shape),                                # embedding table
            pl.BlockSpec((M, D), lambda l: (l, 0)),               # per-layer STM
            pl.BlockSpec((W_ROWS, SLAB_COLS), lambda l: (l, 0)),  # per-layer weights
            const_spec(aux.shape),                                # RoPE / mask constants
            const_spec(bias.shape),                               # key-mask bias row
        ],
        out_specs=pl.BlockSpec((R_ROWS, D), lambda l: (l, 0)),
        scratch_shapes=[pltpu.VMEM((R_ROWS, D), jnp.float32)],    # activation carry
        compiler_params=pltpu.CompilerParams(
            dimension_semantics=("arbitrary",)),
    )(ids, emb, stm_flat, w_slab, aux, bias)


# ---------------- one-time host-side packing (runs at init, NOT per call) ----
def _pack_blocks(blocks, layout, total_rows):
    parts, used = [], 0
    for name, nr, nc in layout:
        arr = blocks[name].astype(jnp.float32)
        parts.append(jnp.pad(arr, ((0, 0), (0, SLAB_COLS - nc))))
        used += nr
    slab = jnp.concatenate(parts, axis=0)
    return jnp.pad(slab, ((0, total_rows - used), (0, 0)))


def pack_weights(layers):
    slabs = []
    for lp in layers:
        blocks = {
            # PyTorch (out, in) -> (in, out) so the kernel does x @ W; q|k|v fused.
            "wqkv": jnp.concatenate([lp["wq"].T, lp["wk"].T, lp["wv"].T], axis=1),
            "wo": lp["wo"].T,
            "cwq": lp["cwq"].T,
            "cwkv": jnp.concatenate([lp["cwk"].T, lp["cwv"].T], axis=1),
            "cwo": lp["cwo"].T,
            "w1v": lp["w1"][:FF].T,
            "w1g": lp["w1"][FF:].T,
            "w2": lp["w2"].T,
            "n1": lp["n1"],
            "bqkv": jnp.concatenate([lp["bq"], lp["bk"], lp["bv"]], axis=1),
            "bo": lp["bo"],
            "n2": lp["n2"], "cbq": lp["cbq"],
            "cbkv": jnp.concatenate([lp["cbk"], lp["cbv"]], axis=1),
            "cbo": lp["cbo"],
            "n3": lp["n3"], "b1v": lp["b1"][:, :FF], "b1g": lp["b1"][:, FF:],
            "b2": lp["b2"],
        }
        slabs.append(_pack_blocks(blocks, W_LAYOUT, W_ROWS))
    return jnp.concatenate(slabs, axis=0)        # (L * W_ROWS, 128)


def build_aux():
    # split-half RoPE tables, full head width, sign folded into sin
    inv_freq = 1.0 / (10000.0 ** (jnp.arange(HALF, dtype=jnp.float32) * 2.0 / HD))
    freqs = jnp.outer(jnp.arange(S, dtype=jnp.float32), inv_freq)       # (S, HALF)
    cos_h = jnp.concatenate([jnp.cos(freqs), jnp.cos(freqs)], axis=-1)  # (S, HD)
    sin_h = jnp.concatenate([-jnp.sin(freqs), jnp.sin(freqs)], axis=-1)
    cos_q = jnp.tile(jnp.tile(cos_h, (1, H)), (B, 1))                   # (B*S, D)
    sin_q = jnp.tile(jnp.tile(sin_h, (1, H)), (B, 1))

    # self-attention block structure (score column n = h*(B*S) + b*S + t)
    n = jnp.arange(N_SELF)
    head_n = n // (B * S)
    batch_n = (n % (B * S)) // S
    head_f = jnp.arange(D) // HD
    head_mask_self = (head_n[:, None] == head_f[None, :]).astype(jnp.float32)
    seg = head_n * B + batch_n
    blkones_self = (seg[:, None] == seg[None, :]).astype(jnp.float32)
    r_batch = jnp.arange(R_ROWS) // S
    batch_mask = (r_batch[:, None] == batch_n[None, :]).astype(jnp.float32)

    # cross-attention block structure (column n = h*M + slot, STM shared over batch)
    nm = jnp.arange(N_MEM)
    head_mask_mem = ((nm // M)[:, None] == head_f[None, :]).astype(jnp.float32)
    blkones_mem = ((nm // M)[:, None] == (nm // M)[None, :]).astype(jnp.float32)

    blocks = {
        "cos_q": cos_q, "sin_q": sin_q,
        "head_mask_self": head_mask_self, "blkones_self": blkones_self,
        "batch_mask": batch_mask,
        "head_mask_mem": head_mask_mem, "blkones_mem": blkones_mem,
    }
    return _pack_blocks(blocks, AUX_LAYOUT, AUX_ROWS)


def prepare_model(params):
    """One-time packing of everything that does not depend on the call inputs."""
    emb = params["embedding"].astype(jnp.float32)
    stm_flat = lax.stop_gradient(
        params["stm"].reshape(NUM_LAYERS * M, D)).astype(jnp.float32)
    w_slab = pack_weights(params["layers"])
    aux = build_aux()
    return emb, stm_flat, w_slab, aux


# ---------------- parameter setup (deterministic, synthetic) -----------------
def init_params(key):
    keys = iter(jax.random.split(key, 256))

    def nrm(shape, scale=0.02):
        return (scale * jax.random.normal(next(keys), shape)).astype(jnp.float32)

    params = {
        "embedding": nrm((VOCAB, D)),
        # ShortTermMemory: (num_layers, 1, stm_size, embed_dim)
        "stm": nrm((NUM_LAYERS, 1, M, D)),
        "layers": [],
    }
    for _ in range(NUM_LAYERS):
        lp = {
            "n1": jnp.ones((1, D), jnp.float32),
            "wq": nrm((D, D)), "bq": nrm((1, D)),
            "wk": nrm((G_SELF * HD, D)), "bk": nrm((1, G_SELF * HD)),
            "wv": nrm((G_SELF * HD, D)), "bv": nrm((1, G_SELF * HD)),
            "wo": nrm((D, D)), "bo": nrm((1, D)),
            "n2": jnp.ones((1, D), jnp.float32),
            "cwq": nrm((D, D)), "cbq": nrm((1, D)),
            "cwk": nrm((G_CROSS * HD, D)), "cbk": nrm((1, G_CROSS * HD)),
            "cwv": nrm((G_CROSS * HD, D)), "cbv": nrm((1, G_CROSS * HD)),
            "cwo": nrm((D, D)), "cbo": nrm((1, D)),
            "n3": jnp.ones((1, D), jnp.float32),
            "w1": nrm((2 * FF, D)), "b1": nrm((1, 2 * FF)),
            "w2": nrm((D, FF)), "b2": nrm((1, D)),
        }
        params["layers"].append(lp)
    return params


# ---------------- per-call forward (packing hoisted out) ---------------------
@jax.jit
def rxt_forward(emb, stm_flat, w_slab, aux, token_ids, attention_mask):
    ids = token_ids.reshape(R_ROWS, 1).astype(jnp.int32)
    if attention_mask is None:
        bias = jnp.zeros((1, N_SELF), jnp.float32)
    else:
        # masked_fill(mask == 0, -inf) emulated with a large negative bias;
        # packed column index n = h*(B*S) + b*S + t
        key_bias = (attention_mask.astype(jnp.float32) - 1.0) * 1e9     # (B, S)
        bias = jnp.tile(key_bias.reshape(1, B * S), (1, H))             # (1, N_SELF)
    hidden_flat = run_fused(ids, emb, stm_flat, w_slab, aux, bias)
    hidden = hidden_flat.reshape(NUM_LAYERS, B, S, D)
    return hidden[-1], hidden


if __name__ == "__main__":
    key = jax.random.PRNGKey(0)
    pkey, ikey = jax.random.split(key)
    params = init_params(pkey)
    emb, stm_flat, w_slab, aux = prepare_model(params)   # one-time packing

    token_ids = jax.random.randint(ikey, (B, S), 0, VOCAB, dtype=jnp.int32)
    attention_mask = jnp.ones((B, S), jnp.int32).at[1, S - 2:].set(0)

    out, hidden = rxt_forward(emb, stm_flat, w_slab, aux, token_ids, attention_mask)
    out = jax.block_until_ready(out)
    hidden = jax.block_until_ready(hidden)

    assert out.shape == (B, S, D), out.shape
    assert hidden.shape == (NUM_LAYERS, B, S, D), hidden.shape
    assert bool(jnp.all(jnp.isfinite(out))) and bool(jnp.all(jnp.isfinite(hidden)))
    print("KERNEL_OK")
</pallas_src>

<mosaic_0001>
module attributes {stable_mosaic.version = 11 : i64} {
  func.func @fused_layers_kernel(%arg0: i32, %arg1: memref<16x1xi32, #tpu.memory_space<vmem>>, %arg2: memref<100x32xf32, #tpu.memory_space<vmem>>, %arg3: memref<8x32xf32, #tpu.memory_space<vmem>>, %arg4: memref<304x128xf32, #tpu.memory_space<vmem>>, %arg5: memref<240x128xf32, #tpu.memory_space<vmem>>, %arg6: memref<1x64xf32, #tpu.memory_space<vmem>>, %arg7: memref<16x32xf32, #tpu.memory_space<vmem>>, %arg8: memref<16x32xf32, #tpu.memory_space<vmem>>) attributes {dimension_semantics = [#tpu.dimension_semantics<arbitrary>], iteration_bounds = array<i64: 2>, scalar_prefetch = 0 : i64, scratch_operands = 1 : i64, tpu.core_type = #tpu.core_type<tc>, window_params = [{pipeline_mode = #tpu.pipeline_mode<synchronous>, transform_indices = @transform_0, window_bounds = array<i64: 16, 1>}, {pipeline_mode = #tpu.pipeline_mode<synchronous>, transform_indices = @transform_1, window_bounds = array<i64: 100, 32>}, {transform_indices = @transform_2, window_bounds = array<i64: 8, 32>}, {transform_indices = @transform_3, window_bounds = array<i64: 304, 128>}, {pipeline_mode = #tpu.pipeline_mode<synchronous>, transform_indices = @transform_4, window_bounds = array<i64: 240, 128>}, {pipeline_mode = #tpu.pipeline_mode<synchronous>, transform_indices = @transform_5, window_bounds = array<i64: 1, 64>}, {transform_indices = @transform_6, window_bounds = array<i64: 16, 32>}]} {
    %c0_i32 = arith.constant 0 : i32
    %0 = arith.cmpi eq, %arg0, %c0_i32 : i32
    %1 = arith.extui %0 : i1 to i32
    %c0_i32_0 = arith.constant 0 : i32
    %2 = arith.cmpi ne, %1, %c0_i32_0 : i32
    scf.if %2 {
      %c0_70 = arith.constant 0 : index
      %c0_71 = arith.constant 0 : index
      %192 = vector.load %arg1[%c0_70, %c0_71] : memref<16x1xi32, #tpu.memory_space<vmem>>, vector<16x1xi32>
      %193 = tpu.iota {dimensions = array<i32: 1>} : vector<16x100xi32>
      %194 = vector.broadcast %192 : vector<16x1xi32> to vector<16x100xi32>
      %195 = arith.cmpi eq, %194, %193 : vector<16x100xi32>
      %196 = arith.extui %195 : vector<16x100xi1> to vector<16x100xi32>
      %197 = arith.sitofp %196 : vector<16x100xi32> to vector<16x100xf32>
      %c0_72 = arith.constant 0 : index
      %c0_73 = arith.constant 0 : index
      %198 = vector.load %arg2[%c0_72, %c0_73] : memref<100x32xf32, #tpu.memory_space<vmem>>, vector<100x32xf32>
      %cst_74 = arith.constant dense<0.000000e+00> : vector<16x32xf32>
      %199 = tpu.matmul %197, %198, %cst_74 {dimension_numbers = #tpu.dot_dimension_numbers<[1], [0], [0], [1], [0, 0, 1, 1], [], []>} : vector<16x100xf32>, vector<100x32xf32>, vector<16x32xf32> -> vector<16x32xf32>
      %c0_75 = arith.constant 0 : index
      %c0_76 = arith.constant 0 : index
      %200 = vector.load %arg8[%c0_75, %c0_76] : memref<16x32xf32, #tpu.memory_space<vmem>>, vector<16x32xf32>
      tpu.vector_store %arg8[%c0_75, %c0_76], %199 {strides = array<i32>} : memref<16x32xf32, #tpu.memory_space<vmem>>, vector<16x32xf32>,
    } else {
    }
    %c0 = arith.constant 0 : index
    %c0_1 = arith.constant 0 : index
    %3 = vector.load %arg8[%c0, %c0_1] : memref<16x32xf32, #tpu.memory_space<vmem>>, vector<16x32xf32>
    %c0_2 = arith.constant 0 : index
    %c0_3 = arith.constant 0 : index
    %4 = vector.load %arg5[%c0_2, %c0_3] : memref<240x128xf32, #tpu.memory_space<vmem>>, vector<16x32xf32>
    %c16 = arith.constant 16 : index
    %c0_4 = arith.constant 0 : index
    %5 = vector.load %arg5[%c16, %c0_4] : memref<240x128xf32, #tpu.memory_space<vmem>>, vector<16x32xf32>
    %6 = vector.extract_strided_slice %4 {offsets = [0, 0], sizes = [16, 8], strides = [1, 1]} : vector<16x32xf32> to vector<16x8xf32>
    %7 = vector.extract_strided_slice %5 {offsets = [0, 0], sizes = [16, 8], strides = [1, 1]} : vector<16x32xf32> to vector<16x8xf32>
    %c32 = arith.constant 32 : index
    %c0_5 = arith.constant 0 : index
    %8 = vector.load %arg5[%c32, %c0_5] : memref<240x128xf32, #tpu.memory_space<vmem>>, vector<64x32xf32>
    %c96 = arith.constant 96 : index
    %c0_6 = arith.constant 0 : index
    %9 = vector.load %arg5[%c96, %c0_6] : memref<240x128xf32, #tpu.memory_space<vmem>>, vector<64x64xf32>
    %c160 = arith.constant 160 : index
    %c0_7 = arith.constant 0 : index
    %10 = vector.load %arg5[%c160, %c0_7] : memref<240x128xf32, #tpu.memory_space<vmem>>, vector<16x64xf32>
    %c176 = arith.constant 176 : index
    %c0_8 = arith.constant 0 : index
    %11 = vector.load %arg5[%c176, %c0_8] : memref<240x128xf32, #tpu.memory_space<vmem>>, vector<32x32xf32>
    %c208 = arith.constant 208 : index
    %c0_9 = arith.constant 0 : index
    %12 = vector.load %arg5[%c208, %c0_9] : memref<240x128xf32, #tpu.memory_space<vmem>>, vector<32x32xf32>
    %c0_10 = arith.constant 0 : index
    %c0_11 = arith.constant 0 : index
    %13 = vector.load %arg3[%c0_10, %c0_11] : memref<8x32xf32, #tpu.memory_space<vmem>>, vector<8x32xf32>
    %c288 = arith.constant 288 : index
    %c0_12 = arith.constant 0 : index
    %14 = vector.load %arg4[%c288, %c0_12] : memref<304x128xf32, #tpu.memory_space<vmem>>, vector<1x32xf32>
    %15 = arith.mulf %3, %3 : vector<16x32xf32>
    %cst = arith.constant dense<0.000000e+00> : vector<16xf32>
    %16 = vector.multi_reduction <add>, %15, %cst [1] : vector<16x32xf32> to vector<16xf32>
    %17 = vector.shape_cast %16 : vector<16xf32> to vector<16x1xf32>
    %cst_13 = arith.constant 3.200000e+01 : f32
    %18 = vector.broadcast %cst_13 : f32 to vector<16x1xf32>
    %19 = arith.divf %17, %18 : vector<16x1xf32>
    %cst_14 = arith.constant 1.1920929E-7 : f32
    %20 = vector.broadcast %cst_14 : f32 to vector<16x1xf32>
    %21 = arith.addf %19, %20 : vector<16x1xf32>
    %22 = math.rsqrt %21 : vector<16x1xf32>
    %23 = vector.broadcast %22 : vector<16x1xf32> to vector<16x32xf32>
    %24 = arith.mulf %3, %23 : vector<16x32xf32>
    %25 = vector.broadcast %14 : vector<1x32xf32> to vector<16x32xf32>
    %26 = arith.mulf %24, %25 : vector<16x32xf32>
    %c0_15 = arith.constant 0 : index
    %c0_16 = arith.constant 0 : index
    %27 = vector.load %arg4[%c0_15, %c0_16] : memref<304x128xf32, #tpu.memory_space<vmem>>, vector<32x48xf32>
    %cst_17 = arith.constant dense<0.000000e+00> : vector<16x48xf32>
    %28 = tpu.matmul %26, %27, %cst_17 {dimension_numbers = #tpu.dot_dimension_numbers<[1], [0], [0], [1], [0, 0, 1, 1], [], []>} : vector<16x32xf32>, vector<32x48xf32>, vector<16x48xf32> -> vector<16x48xf32>
    %c289 = arith.constant 289 : index
    %c0_18 = arith.constant 0 : index
    %29 = vector.load %arg4[%c289, %c0_18] : memref<304x128xf32, #tpu.memory_space<vmem>>, vector<1x48xf32>
    %30 = vector.broadcast %29 : vector<1x48xf32> to vector<16x48xf32>
    %31 = arith.addf %28, %30 : vector<16x48xf32>
    %32 = vector.extract_strided_slice %31 {offsets = [0, 0], sizes = [16, 32], strides = [1, 1]} : vector<16x48xf32> to vector<16x32xf32>
    %33 = arith.mulf %32, %4 : vector<16x32xf32>
    %34 = vector.extract_strided_slice %32 {offsets = [0, 0], sizes = [16, 8], strides = [1, 1]} : vector<16x32xf32> to vector<16x8xf32>
    %35 = vector.extract_strided_slice %34 {offsets = [0, 4], sizes = [16, 4], strides = [1, 1]} : vector<16x8xf32> to vector<16x4xf32>
    %36 = vector.extract_strided_slice %34 {offsets = [0, 0], sizes = [16, 4], strides = [1, 1]} : vector<16x8xf32> to vector<16x4xf32>
    %37 = vector.extract_strided_slice %32 {offsets = [0, 8], sizes = [16, 8], strides = [1, 1]} : vector<16x32xf32> to vector<16x8xf32>
    %38 = vector.extract_strided_slice %37 {offsets = [0, 4], sizes = [16, 4], strides = [1, 1]} : vector<16x8xf32> to vector<16x4xf32>
    %39 = vector.extract_strided_slice %37 {offsets = [0, 0], sizes = [16, 4], strides = [1, 1]} : vector<16x8xf32> to vector<16x4xf32>
    %40 = vector.extract_strided_slice %32 {offsets = [0, 16], sizes = [16, 8], strides = [1, 1]} : vector<16x32xf32> to vector<16x8xf32>
    %41 = vector.extract_strided_slice %40 {offsets = [0, 4], sizes = [16, 4], strides = [1, 1]} : vector<16x8xf32> to vector<16x4xf32>
    %42 = vector.extract_strided_slice %40 {offsets = [0, 0], sizes = [16, 4], strides = [1, 1]} : vector<16x8xf32> to vector<16x4xf32>
    %43 = vector.extract_strided_slice %32 {offsets = [0, 24], sizes = [16, 8], strides = [1, 1]} : vector<16x32xf32> to vector<16x8xf32>
    %44 = vector.extract_strided_slice %43 {offsets = [0, 4], sizes = [16, 4], strides = [1, 1]} : vector<16x8xf32> to vector<16x4xf32>
    %45 = vector.extract_strided_slice %43 {offsets = [0, 0], sizes = [16, 4], strides = [1, 1]} : vector<16x8xf32> to vector<16x4xf32>
    %46 = tpu.concatenate %35, %36, %38, %39, %41, %42, %44, %45 in 1 : vector<16x4xf32>, vector<16x4xf32>, vector<16x4xf32>, vector<16x4xf32>, vector<16x4xf32>, vector<16x4xf32>, vector<16x4xf32>, vector<16x4xf32> -> vector<16x32xf32>
    %47 = arith.mulf %46, %5 : vector<16x32xf32>
    %48 = arith.addf %33, %47 : vector<16x32xf32>
    %49 = vector.extract_strided_slice %31 {offsets = [0, 32], sizes = [16, 8], strides = [1, 1]} : vector<16x48xf32> to vector<16x8xf32>
    %50 = arith.mulf %49, %6 : vector<16x8xf32>
    %51 = vector.extract_strided_slice %49 {offsets = [0, 4], sizes = [16, 4], strides = [1, 1]} : vector<16x8xf32> to vector<16x4xf32>
    %52 = vector.extract_strided_slice %49 {offsets = [0, 0], sizes = [16, 4], strides = [1, 1]} : vector<16x8xf32> to vector<16x4xf32>
    %53 = tpu.concatenate %51, %52 in 1 : vector<16x4xf32>, vector<16x4xf32> -> vector<16x8xf32>
    %54 = arith.mulf %53, %7 : vector<16x8xf32>
    %55 = arith.addf %50, %54 : vector<16x8xf32>
    %56 = vector.extract_strided_slice %31 {offsets = [0, 40], sizes = [16, 8], strides = [1, 1]} : vector<16x48xf32> to vector<16x8xf32>
    %c0_19 = arith.constant 0 : index
    %c0_20 = arith.constant 0 : index
    %57 = vector.load %arg6[%c0_19, %c0_20] : memref<1x64xf32, #tpu.memory_space<vmem>>, vector<1x64xf32>
    %c32_21 = arith.constant 32 : index
    %c0_22 = arith.constant 0 : index
    %58 = vector.load %arg4[%c32_21, %c0_22] : memref<304x128xf32, #tpu.memory_space<vmem>>, vector<32x32xf32>
    %c290 = arith.constant 290 : index
    %c0_23 = arith.constant 0 : index
    %59 = vector.load %arg4[%c290, %c0_23] : memref<304x128xf32, #tpu.memory_space<vmem>>, vector<1x32xf32>
    %60 = tpu.concatenate %55, %55, %55, %55 in 0 : vector<16x8xf32>, vector<16x8xf32>, vector<16x8xf32>, vector<16x8xf32> -> vector<64x8xf32>
    %61 = tpu.concatenate %60, %60, %60, %60 in 1 : vector<64x8xf32>, vector<64x8xf32>, vector<64x8xf32>, vector<64x8xf32> -> vector<64x32xf32>
    %62 = arith.mulf %61, %8 : vector<64x32xf32>
    %63 = tpu.concatenate %56, %56, %56, %56 in 0 : vector<16x8xf32>, vector<16x8xf32>, vector<16x8xf32>, vector<16x8xf32> -> vector<64x8xf32>
    %64 = tpu.concatenate %63, %63, %63, %63 in 1 : vector<64x8xf32>, vector<64x8xf32>, vector<64x8xf32>, vector<64x8xf32> -> vector<64x32xf32>
    %65 = arith.mulf %64, %8 : vector<64x32xf32>
    %cst_24 = arith.constant dense<0.000000e+00> : vector<16x64xf32>
    %66 = tpu.matmul %48, %62, %cst_24 {dimension_numbers = #tpu.dot_dimension_numbers<[1], [1], [0], [0], [0, 0, 1, 0], [], []>} : vector<16x32xf32>, vector<64x32xf32>, vector<16x64xf32> -> vector<16x64xf32>
    %cst_25 = arith.constant 0.353553385 : f32
    %67 = vector.broadcast %cst_25 : f32 to vector<16x64xf32>
    %68 = arith.mulf %66, %67 : vector<16x64xf32>
    %69 = vector.broadcast %57 : vector<1x64xf32> to vector<16x64xf32>
    %70 = arith.addf %68, %69 : vector<16x64xf32>
    %cst_26 = arith.constant dense<0xFF800000> : vector<16xf32>
    %71 = vector.multi_reduction <maximumf>, %70, %cst_26 [1] : vector<16x64xf32> to vector<16xf32>
    %72 = vector.shape_cast %71 : vector<16xf32> to vector<16x1xf32>
    %73 = vector.broadcast %72 : vector<16x1xf32> to vector<16x64xf32>
    %74 = arith.subf %70, %73 : vector<16x64xf32>
    %75 = math.exp %74 : vector<16x64xf32>
    %cst_27 = arith.constant dense<0.000000e+00> : vector<16x64xf32>
    %76 = tpu.matmul %75, %9, %cst_27 {dimension_numbers = #tpu.dot_dimension_numbers<[1], [0], [0], [1], [0, 0, 1, 1], [], []>} : vector<16x64xf32>, vector<64x64xf32>, vector<16x64xf32> -> vector<16x64xf32>
    %cst_28 = arith.constant 1.000000e-30 : f32
    %77 = vector.broadcast %cst_28 : f32 to vector<16x64xf32>
    %78 = arith.maximumf %76, %77 : vector<16x64xf32>
    %79 = tpu.reciprocal %78 {approx = true} : vector<16x64xf32> -> vector<16x64xf32>
    %80 = arith.mulf %75, %79 : vector<16x64xf32>
    %81 = arith.mulf %80, %10 : vector<16x64xf32>
    %cst_29 = arith.constant dense<0.000000e+00> : vector<16x32xf32>
    %82 = tpu.matmul %81, %65, %cst_29 {dimension_numbers = #tpu.dot_dimension_numbers<[1], [0], [0], [1], [0, 0, 1, 1], [], []>} : vector<16x64xf32>, vector<64x32xf32>, vector<16x32xf32> -> vector<16x32xf32>
    %cst_30 = arith.constant dense<0.000000e+00> : vector<16x32xf32>
    %83 = tpu.matmul %82, %58, %cst_30 {dimension_numbers = #tpu.dot_dimension_numbers<[1], [0], [0], [1], [0, 0, 1, 1], [], []>} : vector<16x32xf32>, vector<32x32xf32>, vector<16x32xf32> -> vector<16x32xf32>
    %84 = vector.broadcast %59 : vector<1x32xf32> to vector<16x32xf32>
    %85 = arith.addf %83, %84 : vector<16x32xf32>
    %86 = arith.addf %3, %85 : vector<16x32xf32>
    %c291 = arith.constant 291 : index
    %c0_31 = arith.constant 0 : index
    %87 = vector.load %arg4[%c291, %c0_31] : memref<304x128xf32, #tpu.memory_space<vmem>>, vector<1x32xf32>
    %88 = arith.mulf %86, %86 : vector<16x32xf32>
    %cst_32 = arith.constant dense<0.000000e+00> : vector<16xf32>
    %89 = vector.multi_reduction <add>, %88, %cst_32 [1] : vector<16x32xf32> to vector<16xf32>
    %90 = vector.shape_cast %89 : vector<16xf32> to vector<16x1xf32>
    %cst_33 = arith.constant 3.200000e+01 : f32
    %91 = vector.broadcast %cst_33 : f32 to vector<16x1xf32>
    %92 = arith.divf %90, %91 : vector<16x1xf32>
    %cst_34 = arith.constant 1.1920929E-7 : f32
    %93 = vector.broadcast %cst_34 : f32 to vector<16x1xf32>
    %94 = arith.addf %92, %93 : vector<16x1xf32>
    %95 = math.rsqrt %94 : vector<16x1xf32>
    %96 = vector.broadcast %95 : vector<16x1xf32> to vector<16x32xf32>
    %97 = arith.mulf %86, %96 : vector<16x32xf32>
    %98 = vector.broadcast %87 : vector<1x32xf32> to vector<16x32xf32>
    %99 = arith.mulf %97, %98 : vector<16x32xf32>
    %c64 = arith.constant 64 : index
    %c0_35 = arith.constant 0 : index
    %100 = vector.load %arg4[%c64, %c0_35] : memref<304x128xf32, #tpu.memory_space<vmem>>, vector<32x32xf32>
    %cst_36 = arith.constant dense<0.000000e+00> : vector<16x32xf32>
    %101 = tpu.matmul %99, %100, %cst_36 {dimension_numbers = #tpu.dot_dimension_numbers<[1], [0], [0], [1], [0, 0, 1, 1], [], []>} : vector<16x32xf32>, vector<32x32xf32>, vector<16x32xf32> -> vector<16x32xf32>
    %c292 = arith.constant 292 : index
    %c0_37 = arith.constant 0 : index
    %102 = vector.load %arg4[%c292, %c0_37] : memref<304x128xf32, #tpu.memory_space<vmem>>, vector<1x32xf32>
    %103 = vector.broadcast %102 : vector<1x32xf32> to vector<16x32xf32>
    %104 = arith.addf %101, %103 : vector<16x32xf32>
    %105 = arith.mulf %104, %4 : vector<16x32xf32>
    %106 = vector.extract_strided_slice %104 {offsets = [0, 0], sizes = [16, 8], strides = [1, 1]} : vector<16x32xf32> to vector<16x8xf32>
    %107 = vector.extract_strided_slice %106 {offsets = [0, 4], sizes = [16, 4], strides = [1, 1]} : vector<16x8xf32> to vector<16x4xf32>
    %108 = vector.extract_strided_slice %106 {offsets = [0, 0], sizes = [16, 4], strides = [1, 1]} : vector<16x8xf32> to vector<16x4xf32>
    %109 = vector.extract_strided_slice %104 {offsets = [0, 8], sizes = [16, 8], strides = [1, 1]} : vector<16x32xf32> to vector<16x8xf32>
    %110 = vector.extract_strided_slice %109 {offsets = [0, 4], sizes = [16, 4], strides = [1, 1]} : vector<16x8xf32> to vector<16x4xf32>
    %111 = vector.extract_strided_slice %109 {offsets = [0, 0], sizes = [16, 4], strides = [1, 1]} : vector<16x8xf32> to vector<16x4xf32>
    %112 = vector.extract_strided_slice %104 {offsets = [0, 16], sizes = [16, 8], strides = [1, 1]} : vector<16x32xf32> to vector<16x8xf32>
    %113 = vector.extract_strided_slice %112 {offsets = [0, 4], sizes = [16, 4], strides = [1, 1]} : vector<16x8xf32> to vector<16x4xf32>
    %114 = vector.extract_strided_slice %112 {offsets = [0, 0], sizes = [16, 4], strides = [1, 1]} : vector<16x8xf32> to vector<16x4xf32>
    %115 = vector.extract_strided_slice %104 {offsets = [0, 24], sizes = [16, 8], strides = [1, 1]} : vector<16x32xf32> to vector<16x8xf32>
    %116 = vector.extract_strided_slice %115 {offsets = [0, 4], sizes = [16, 4], strides = [1, 1]} : vector<16x8xf32> to vector<16x4xf32>
    %117 = vector.extract_strided_slice %115 {offsets = [0, 0], sizes = [16, 4], strides = [1, 1]} : vector<16x8xf32> to vector<16x4xf32>
    %118 = tpu.concatenate %107, %108, %110, %111, %113, %114, %116, %117 in 1 : vector<16x4xf32>, vector<16x4xf32>, vector<16x4xf32>, vector<16x4xf32>, vector<16x4xf32>, vector<16x4xf32>, vector<16x4xf32>, vector<16x4xf32> -> vector<16x32xf32>
    %119 = arith.mulf %118, %5 : vector<16x32xf32>
    %120 = arith.addf %105, %119 : vector<16x32xf32>
    %c96_38 = arith.constant 96 : index
    %c0_39 = arith.constant 0 : index
    %121 = vector.load %arg4[%c96_38, %c0_39] : memref<304x128xf32, #tpu.memory_space<vmem>>, vector<32x16xf32>
    %cst_40 = arith.constant dense<0.000000e+00> : vector<8x16xf32>
    %122 = tpu.matmul %13, %121, %cst_40 {dimension_numbers = #tpu.dot_dimension_numbers<[1], [0], [0], [1], [0, 0, 1, 1], [], []>} : vector<8x32xf32>, vector<32x16xf32>, vector<8x16xf32> -> vector<8x16xf32>
    %c293 = arith.constant 293 : index
    %c0_41 = arith.constant 0 : index
    %123 = vector.load %arg4[%c293, %c0_41] : memref<304x128xf32, #tpu.memory_space<vmem>>, vector<1x16xf32>
    %124 = vector.broadcast %123 : vector<1x16xf32> to vector<8x16xf32>
    %125 = arith.addf %122, %124 : vector<8x16xf32>
    %126 = vector.extract_strided_slice %125 {offsets = [0, 0], sizes = [8, 8], strides = [1, 1]} : vector<8x16xf32> to vector<8x8xf32>
    %127 = vector.extract_strided_slice %125 {offsets = [0, 8], sizes = [8, 8], strides = [1, 1]} : vector<8x16xf32> to vector<8x8xf32>
    %c128 = arith.constant 128 : index
    %c0_42 = arith.constant 0 : index
    %128 = vector.load %arg4[%c128, %c0_42] : memref<304x128xf32, #tpu.memory_space<vmem>>, vector<32x32xf32>
    %c294 = arith.constant 294 : index
    %c0_43 = arith.constant 0 : index
    %129 = vector.load %arg4[%c294, %c0_43] : memref<304x128xf32, #tpu.memory_space<vmem>>, vector<1x32xf32>
    %130 = tpu.concatenate %126, %126, %126, %126 in 0 : vector<8x8xf32>, vector<8x8xf32>, vector<8x8xf32>, vector<8x8xf32> -> vector<32x8xf32>
    %131 = tpu.concatenate %130, %130, %130, %130 in 1 : vector<32x8xf32>, vector<32x8xf32>, vector<32x8xf32>, vector<32x8xf32> -> vector<32x32xf32>
    %132 = arith.mulf %131, %11 : vector<32x32xf32>
    %133 = tpu.concatenate %127, %127, %127, %127 in 0 : vector<8x8xf32>, vector<8x8xf32>, vector<8x8xf32>, vector<8x8xf32> -> vector<32x8xf32>
    %134 = tpu.concatenate %133, %133, %133, %133 in 1 : vector<32x8xf32>, vector<32x8xf32>, vector<32x8xf32>, vector<32x8xf32> -> vector<32x32xf32>
    %135 = arith.mulf %134, %11 : vector<32x32xf32>
    %cst_44 = arith.constant dense<0.000000e+00> : vector<16x32xf32>
    %136 = tpu.matmul %120, %132, %cst_44 {dimension_numbers = #tpu.dot_dimension_numbers<[1], [1], [0], [0], [0, 0, 1, 0], [], []>} : vector<16x32xf32>, vector<32x32xf32>, vector<16x32xf32> -> vector<16x32xf32>
    %cst_45 = arith.constant 0.353553385 : f32
    %137 = vector.broadcast %cst_45 : f32 to vector<16x32xf32>
    %138 = arith.mulf %136, %137 : vector<16x32xf32>
    %cst_46 = arith.constant dense<0xFF800000> : vector<16xf32>
    %139 = vector.multi_reduction <maximumf>, %138, %cst_46 [1] : vector<16x32xf32> to vector<16xf32>
    %140 = vector.shape_cast %139 : vector<16xf32> to vector<16x1xf32>
    %141 = vector.broadcast %140 : vector<16x1xf32> to vector<16x32xf32>
    %142 = arith.subf %138, %141 : vector<16x32xf32>
    %143 = math.exp %142 : vector<16x32xf32>
    %cst_47 = arith.constant dense<0.000000e+00> : vector<16x32xf32>
    %144 = tpu.matmul %143, %12, %cst_47 {dimension_numbers = #tpu.dot_dimension_numbers<[1], [0], [0], [1], [0, 0, 1, 1], [], []>} : vector<16x32xf32>, vector<32x32xf32>, vector<16x32xf32> -> vector<16x32xf32>
    %cst_48 = arith.constant 1.000000e-30 : f32
    %145 = vector.broadcast %cst_48 : f32 to vector<16x32xf32>
    %146 = arith.maximumf %144, %145 : vector<16x32xf32>
    %147 = tpu.reciprocal %146 {approx = true} : vector<16x32xf32> -> vector<16x32xf32>
    %148 = arith.mulf %143, %147 : vector<16x32xf32>
    %cst_49 = arith.constant dense<0.000000e+00> : vector<16x32xf32>
    %149 = tpu.matmul %148, %135, %cst_49 {dimension_numbers = #tpu.dot_dimension_numbers<[1], [0], [0], [1], [0, 0, 1, 1], [], []>} : vector<16x32xf32>, vector<32x32xf32>, vector<16x32xf32> -> vector<16x32xf32>
    %cst_50 = arith.constant dense<0.000000e+00> : vector<16x32xf32>
    %150 = tpu.matmul %149, %128, %cst_50 {dimension_numbers = #tpu.dot_dimension_numbers<[1], [0], [0], [1], [0, 0, 1, 1], [], []>} : vector<16x32xf32>, vector<32x32xf32>, vector<16x32xf32> -> vector<16x32xf32>
    %151 = vector.broadcast %129 : vector<1x32xf32> to vector<16x32xf32>
    %152 = arith.addf %150, %151 : vector<16x32xf32>
    %153 = arith.addf %86, %152 : vector<16x32xf32>
    %c295 = arith.constant 295 : index
    %c0_51 = arith.constant 0 : index
    %154 = vector.load %arg4[%c295, %c0_51] : memref<304x128xf32, #tpu.memory_space<vmem>>, vector<1x32xf32>
    %155 = arith.mulf %153, %153 : vector<16x32xf32>
    %cst_52 = arith.constant dense<0.000000e+00> : vector<16xf32>
    %156 = vector.multi_reduction <add>, %155, %cst_52 [1] : vector<16x32xf32> to vector<16xf32>
    %157 = vector.shape_cast %156 : vector<16xf32> to vector<16x1xf32>
    %cst_53 = arith.constant 3.200000e+01 : f32
    %158 = vector.broadcast %cst_53 : f32 to vector<16x1xf32>
    %159 = arith.divf %157, %158 : vector<16x1xf32>
    %cst_54 = arith.constant 1.1920929E-7 : f32
    %160 = vector.broadcast %cst_54 : f32 to vector<16x1xf32>
    %161 = arith.addf %159, %160 : vector<16x1xf32>
    %162 = math.rsqrt %161 : vector<16x1xf32>
    %163 = vector.broadcast %162 : vector<16x1xf32> to vector<16x32xf32>
    %164 = arith.mulf %153, %163 : vector<16x32xf32>
    %165 = vector.broadcast %154 : vector<1x32xf32> to vector<16x32xf32>
    %166 = arith.mulf %164, %165 : vector<16x32xf32>
    %c160_55 = arith.constant 160 : index
    %c0_56 = arith.constant 0 : index
    %167 = vector.load %arg4[%c160_55, %c0_56] : memref<304x128xf32, #tpu.memory_space<vmem>>, vector<32x64xf32>
    %cst_57 = arith.constant dense<0.000000e+00> : vector<16x64xf32>
    %168 = tpu.matmul %166, %167, %cst_57 {dimension_numbers = #tpu.dot_dimension_numbers<[1], [0], [0], [1], [0, 0, 1, 1], [], []>} : vector<16x32xf32>, vector<32x64xf32>, vector<16x64xf32> -> vector<16x64xf32>
    %c296 = arith.constant 296 : index
    %c0_58 = arith.constant 0 : index
    %169 = vector.load %arg4[%c296, %c0_58] : memref<304x128xf32, #tpu.memory_space<vmem>>, vector<1x64xf32>
    %170 = vector.broadcast %169 : vector<1x64xf32> to vector<16x64xf32>
    %171 = arith.addf %168, %170 : vector<16x64xf32>
    %c192 = arith.constant 192 : index
    %c0_59 = arith.constant 0 : index
    %172 = vector.load %arg4[%c192, %c0_59] : memref<304x128xf32, #tpu.memory_space<vmem>>, vector<32x64xf32>
    %cst_60 = arith.constant dense<0.000000e+00> : vector<16x64xf32>
    %173 = tpu.matmul %166, %172, %cst_60 {dimension_numbers = #tpu.dot_dimension_numbers<[1], [0], [0], [1], [0, 0, 1, 1], [], []>} : vector<16x32xf32>, vector<32x64xf32>, vector<16x64xf32> -> vector<16x64xf32>
    %c297 = arith.constant 297 : index
    %c0_61 = arith.constant 0 : index
    %174 = vector.load %arg4[%c297, %c0_61] : memref<304x128xf32, #tpu.memory_space<vmem>>, vector<1x64xf32>
    %175 = vector.broadcast %174 : vector<1x64xf32> to vector<16x64xf32>
    %176 = arith.addf %173, %175 : vector<16x64xf32>
    %177 = arith.mulf %171, %176 : vector<16x64xf32>
    %178 = arith.negf %176 : vector<16x64xf32>
    %179 = math.exp %178 : vector<16x64xf32>
    %cst_62 = arith.constant 1.000000e+00 : f32
    %180 = vector.broadcast %cst_62 : f32 to vector<16x64xf32>
    %181 = arith.addf %180, %179 : vector<16x64xf32>
    %182 = arith.divf %180, %181 : vector<16x64xf32>
    %183 = arith.mulf %177, %182 : vector<16x64xf32>
    %c224 = arith.constant 224 : index
    %c0_63 = arith.constant 0 : index
    %184 = vector.load %arg4[%c224, %c0_63] : memref<304x128xf32, #tpu.memory_space<vmem>>, vector<64x32xf32>
    %cst_64 = arith.constant dense<0.000000e+00> : vector<16x32xf32>
    %185 = tpu.matmul %183, %184, %cst_64 {dimension_numbers = #tpu.dot_dimension_numbers<[1], [0], [0], [1], [0, 0, 1, 1], [], []>} : vector<16x64xf32>, vector<64x32xf32>, vector<16x32xf32> -> vector<16x32xf32>
    %186 = arith.addf %153, %185 : vector<16x32xf32>
    %c298 = arith.constant 298 : index
    %c0_65 = arith.constant 0 : index
    %187 = vector.load %arg4[%c298, %c0_65] : memref<304x128xf32, #tpu.memory_space<vmem>>, vector<1x32xf32>
    %188 = vector.broadcast %187 : vector<1x32xf32> to vector<16x32xf32>
    %189 = arith.addf %186, %188 : vector<16x32xf32>
    %c0_66 = arith.constant 0 : index
    %c0_67 = arith.constant 0 : index
    %190 = vector.load %arg8[%c0_66, %c0_67] : memref<16x32xf32, #tpu.memory_space<vmem>>, vector<16x32xf32>
    tpu.vector_store %arg8[%c0_66, %c0_67], %189 {strides = array<i32>} : memref<16x32xf32, #tpu.memory_space<vmem>>, vector<16x32xf32>,
    %c0_68 = arith.constant 0 : index
    %c0_69 = arith.constant 0 : index
    %191 = vector.load %arg7[%c0_68, %c0_69] : memref<16x32xf32, #tpu.memory_space<vmem>>, vector<16x32xf32>
    tpu.vector_store %arg7[%c0_68, %c0_69], %189 {strides = array<i32>} : memref<16x32xf32, #tpu.memory_space<vmem>>, vector<16x32xf32>,
    return
  }
  func.func @transform_0(%arg0: i32) -> (i32, i32) {
    %c0_i32 = arith.constant 0 : i32
    %c0_i32_0 = arith.constant 0 : i32
    %c0_i32_1 = arith.constant 0 : i32
    return %c0_i32, %c0_i32_0 : i32, i32
  }
  func.func @transform_1(%arg0: i32) -> (i32, i32) {
    %c0_i32 = arith.constant 0 : i32
    %c0_i32_0 = arith.constant 0 : i32
    %c0_i32_1 = arith.constant 0 : i32
    return %c0_i32, %c0_i32_0 : i32, i32
  }
  func.func @transform_2(%arg0: i32) -> (i32, i32) {
    %c0_i32 = arith.constant 0 : i32
    %c0_i32_0 = arith.constant 0 : i32
    return %arg0, %c0_i32 : i32, i32
  }
  func.func @transform_3(%arg0: i32) -> (i32, i32) {
    %c0_i32 = arith.constant 0 : i32
    %c0_i32_0 = arith.constant 0 : i32
    return %arg0, %c0_i32 : i32, i32
  }
  func.func @transform_4(%arg0: i32) -> (i32, i32) {
    %c0_i32 = arith.constant 0 : i32
    %c0_i32_0 = arith.constant 0 : i32
    %c0_i32_1 = arith.constant 0 : i32
    return %c0_i32, %c0_i32_0 : i32, i32
  }
  func.func @transform_5(%arg0: i32) -> (i32, i32) {
    %c0_i32 = arith.constant 0 : i32
    %c0_i32_0 = arith.constant 0 : i32
    %c0_i32_1 = arith.constant 0 : i32
    return %c0_i32, %c0_i32_0 : i32, i32
  }
  func.func @transform_6(%arg0: i32) -> (i32, i32) {
    %c0_i32 = arith.constant 0 : i32
    %c0_i32_0 = arith.constant 0 : i32
    return %arg0, %c0_i32 : i32, i32
  }
}

</mosaic_0001>

<llo_original>
// kernel: rxt_forward.1
$region0: #{rxt_forward.1}
  #allocation0 [shape = 'u32[]', space=smem, size = 0x4, offset = 0x4, fixed_abs, tag = 'smem constant byte address 0x4 - core index']
  #allocation1 [shape = 'u32[144,128]{1,0:T(1,128)}', space=vmem, size = 0x12000, scoped, tag = 'internal scratch']
  #allocation2 [shape = 'f32[16,32]{1,0:T(8,128)}', space=vmem, size = 0x2000, scoped, tag = 'scratch operand']
  %s0 = inlined_call_operand.vmem [shape: s32[16,1], index: 0, kind: input, shape index: {}]
  %s1 = inlined_call_operand.vmem [shape: f32[100,32], index: 1, kind: input, shape index: {}]
  %s2 = inlined_call_operand.vmem [shape: f32[16,32], index: 2, kind: input, shape index: {}]
  %s3 = inlined_call_operand.hbm [shape: f32[608,128], index: 3, kind: input, shape index: {}]
  %s4 = inlined_call_operand.hbm [shape: f32[240,128], index: 4, kind: input, shape index: {}]
  %s5 = inlined_call_operand.vmem [shape: f32[1,64], index: 5, kind: input, shape index: {}]
  %s6 = inlined_call_operand.vmem [shape: f32[32,32], index: 6, kind: output, shape index: {}]
  %s7 = sld [smem:[#allocation0]]
  $region69: #{rxt_forward.1} parent=0
    _
  %s9 = ssub.s32 1, %s7
  %s10 = scalar_select 0, %s9, %s7
  $region1: #{rxt_forward.1} parent=0
    #allocation3 [shape = 'u8[311296]{0}', space=vmem, size = 0x4c000, scoped, tag = 'input window, operand 3']
    #allocation4 [shape = 's32[2]{0}', space=sflag, size = 0x8, scoped, tag = 'scoped memory for rxt_forward.1']
    #allocation5 [shape = 'u8[122880]{0}', space=vmem, size = 0x1e000, scoped, tag = 'input window, operand 4, single buffered']
    #allocation6 [shape = 's32[1]{0}', space=sflag, size = 0x4, scoped, tag = 'scoped memory for rxt_forward.1']
    %11 = vsyncpa [#allocation4], 0
    %s12 = scalar_lea.sflag [#allocation4], 1
    %13 = vsyncpa %s12, 0
    %14 = vsyncpa [#allocation6], 0
    loop: start=0, step=1, limit=4
    $region2: #{rxt_forward.1} parent=1 // loop_pre_header
      _
    $region3: #{rxt_forward.1} parent=1 // loop_header
      %s16 = sphi 0, %s20
      %p17 = scmp.ge.s32.totalorder %s16, 4
      %s24 = sphi 0, %s24
      %s26 = sphi 0, %s24
      %s27 = sphi 0, %s26
      %s41 = sphi 0, %s27
      %s45 = sphi 0, %s45
      %s47 = sphi 0, %s45
      %s48 = sphi 0, %s47
      %s62 = sphi 0, %s48
      %s68 = sphi 0, %s70
      %s71 = sphi 0, %s68
      %s72 = sphi 0, %s71
      %s88 = sphi 0, %s72
      %s94 = sphi 0, %s96
      %s97 = sphi 0, %s94
      %s98 = sphi 0, %s97
      %s114 = sphi 0, %s98
      %s118 = sphi 0, %s118
      %s120 = sphi 0, %s118
      %s121 = sphi 0, %s120
      %s135 = sphi 0, %s121
      %s139 = sphi 0, %s139
      %s141 = sphi 0, %s139
      %s142 = sphi 0, %s141
      %s156 = sphi 0, %s142
      %s162 = sphi 0, %s164
      %s165 = sphi 0, %s162
      %s166 = sphi 0, %s165
      %s182 = sphi 0, %s166
    $region4: #{rxt_forward.1} parent=1 // loop_header_branch
      %19 = sbr.rel (%p17) target = $region8
    $region5: #{rxt_forward.1} parent=1 // loop_body
      %s21 = ssub.s32 %s16, 1
      %s22 = ssub.s32 %s16, 2
      %s23 = sadd.s32 %s16, 1
      %s25 = sadd.s32 %s24, 1
      %p28 = scmp.eq.s32.totalorder %s16, 1
      %p29 = scmp.ne.s32.totalorder %s24, %s26
      %p30 = scmp.eq.s32.totalorder %s16, 0
      %p31 = por %p29, %p30
      %p32 = scmp.ne.s32.totalorder %s24, %s26
      %p33 = scmp.eq.s32.totalorder %s21, 1
      %p34 = por %p32, %p33
      %p35 = scmp.ne.s32.totalorder %s26, %s27
      %p36 = scmp.eq.s32.totalorder %s21, 0
      %p37 = por %p35, %p36
      %p38 = scmp.ne.s32.totalorder %s26, %s27
      %p39 = scmp.eq.s32.totalorder %s22, 1
      %p40 = por %p38, %p39
      %p42 = scmp.ne.s32.totalorder %s27, %s41
      %p43 = scmp.eq.s32.totalorder %s22, 0
      %p44 = por %p42, %p43
      %s46 = sadd.s32 %s45, 1
      %p49 = scmp.eq.s32.totalorder %s16, 1
      %p50 = scmp.ne.s32.totalorder %s45, %s47
      %p51 = scmp.eq.s32.totalorder %s16, 0
      %p52 = por %p50, %p51
      %p53 = scmp.ne.s32.totalorder %s45, %s47
      %p54 = scmp.eq.s32.totalorder %s21, 1
      %p55 = por %p53, %p54
      %p56 = scmp.ne.s32.totalorder %s47, %s48
      %p57 = scmp.eq.s32.totalorder %s21, 0
      %p58 = por %p56, %p57
      %p59 = scmp.ne.s32.totalorder %s47, %s48
      %p60 = scmp.eq.s32.totalorder %s22, 1
      %p61 = por %p59, %p60
      %p63 = scmp.ne.s32.totalorder %s48, %s62
      %p64 = scmp.eq.s32.totalorder %s22, 0
      %p65 = por %p63, %p64
      %s66 = ssub.s32 %s16, %s23
      %p67 = scmp.eq.s32.totalorder %s66, 0
      %s69 = sadd.s32 %s68, 1
      %s70 = scalar_select %p67, %s68, %s69
      %p73 = pneg %p67
      %p74 = scmp.eq.s32.totalorder %s16, 1
      %p75 = por %p73, %p74
      %p76 = scmp.ne.s32.totalorder %s68, %s71
      %p77 = scmp.eq.s32.totalorder %s16, 0
      %p78 = por %p76, %p77
      %p79 = scmp.ne.s32.totalorder %s68, %s71
      %p80 = scmp.eq.s32.totalorder %s21, 1
      %p81 = por %p79, %p80
      %p82 = scmp.ne.s32.totalorder %s71, %s72
      %p83 = scmp.eq.s32.totalorder %s21, 0
      %p84 = por %p82, %p83
      %p85 = scmp.ne.s32.totalorder %s71, %s72
      %p86 = scmp.eq.s32.totalorder %s22, 1
      %p87 = por %p85, %p86
      %p89 = scmp.ne.s32.totalorder %s72, %s88
      %p90 = scmp.eq.s32.totalorder %s22, 0
      %p91 = por %p89, %p90
      %s92 = ssub.s32 %s16, %s23
      %p93 = scmp.eq.s32.totalorder %s92, 0
      %s95 = sadd.s32 %s94, 1
      %s96 = scalar_select %p93, %s94, %s95
      %p99 = pneg %p93
      %p100 = scmp.eq.s32.totalorder %s16, 1
      %p101 = por %p99, %p100
      %p102 = scmp.ne.s32.totalorder %s94, %s97
      %p103 = scmp.eq.s32.totalorder %s16, 0
      %p104 = por %p102, %p103
      %p105 = scmp.ne.s32.totalorder %s94, %s97
      %p106 = scmp.eq.s32.totalorder %s21, 1
      %p107 = por %p105, %p106
      %p108 = scmp.ne.s32.totalorder %s97, %s98
      %p109 = scmp.eq.s32.totalorder %s21, 0
      %p110 = por %p108, %p109
      %p111 = scmp.ne.s32.totalorder %s97, %s98
      %p112 = scmp.eq.s32.totalorder %s22, 1
      %p113 = por %p111, %p112
      %p115 = scmp.ne.s32.totalorder %s98, %s114
      %p116 = scmp.eq.s32.totalorder %s22, 0
      %p117 = por %p115, %p116
      %s119 = sadd.s32 %s118, 1
      %p122 = scmp.eq.s32.totalorder %s16, 1
      %p123 = scmp.ne.s32.totalorder %s118, %s120
      %p124 = scmp.eq.s32.totalorder %s16, 0
      %p125 = por %p123, %p124
      %p126 = scmp.ne.s32.totalorder %s118, %s120
      %p127 = scmp.eq.s32.totalorder %s21, 1
      %p128 = por %p126, %p127
      %p129 = scmp.ne.s32.totalorder %s120, %s121
      %p130 = scmp.eq.s32.totalorder %s21, 0
      %p131 = por %p129, %p130
      %p132 = scmp.ne.s32.totalorder %s120, %s121
      %p133 = scmp.eq.s32.totalorder %s22, 1
      %p134 = por %p132, %p133
      %p136 = scmp.ne.s32.totalorder %s121, %s135
      %p137 = scmp.eq.s32.totalorder %s22, 0
      %p138 = por %p136, %p137
      %s140 = sadd.s32 %s139, 1
      %p143 = scmp.eq.s32.totalorder %s16, 1
      %p144 = scmp.ne.s32.totalorder %s139, %s141
      %p145 = scmp.eq.s32.totalorder %s16, 0
      %p146 = por %p144, %p145
      %p147 = scmp.ne.s32.totalorder %s139, %s141
      %p148 = scmp.eq.s32.totalorder %s21, 1
      %p149 = por %p147, %p148
      %p150 = scmp.ne.s32.totalorder %s141, %s142
      %p151 = scmp.eq.s32.totalorder %s21, 0
      %p152 = por %p150, %p151
      %p153 = scmp.ne.s32.totalorder %s141, %s142
      %p154 = scmp.eq.s32.totalorder %s22, 1
      %p155 = por %p153, %p154
      %p157 = scmp.ne.s32.totalorder %s142, %s156
      %p158 = scmp.eq.s32.totalorder %s22, 0
      %p159 = por %p157, %p158
      %s160 = ssub.s32 %s16, %s23
      %p161 = scmp.eq.s32.totalorder %s160, 0
      %s163 = sadd.s32 %s162, 1
      %s164 = scalar_select %p161, %s162, %s163
      %p167 = pneg %p161
      %p168 = scmp.eq.s32.totalorder %s16, 1
      %p169 = por %p167, %p168
      %p170 = scmp.ne.s32.totalorder %s162, %s165
      %p171 = scmp.eq.s32.totalorder %s16, 0
      %p172 = por %p170, %p171
      %p173 = scmp.ne.s32.totalorder %s162, %s165
      %p174 = scmp.eq.s32.totalorder %s21, 1
      %p175 = por %p173, %p174
      %p176 = scmp.ne.s32.totalorder %s165, %s166
      %p177 = scmp.eq.s32.totalorder %s21, 0
      %p178 = por %p176, %p177
      %p179 = scmp.ne.s32.totalorder %s165, %s166
      %p180 = scmp.eq.s32.totalorder %s22, 1
      %p181 = por %p179, %p180
      %p183 = scmp.ne.s32.totalorder %s166, %s182
      %p184 = scmp.eq.s32.totalorder %s22, 0
      %p185 = por %p183, %p184
      %p186 = scmp.le.s32.totalorder 1, %s16
      %p187 = scmp.lt.s32.totalorder %s16, 3
      %p188 = pnand %p186, %p187
      %p189 = pneg %p188
      // Predicated region
      $region9: #{rxt_forward.1} parent=5 // pred_check
        _
      $region10: #{rxt_forward.1} parent=5 // pred_check_branch
        %191 = sbr.rel (%p188) target = $region12
      $region11: #{rxt_forward.1} parent=5 // pred_region
        %s192 = ssub.s32 %s16, 1
        // Predicated region
        $region13: #{rxt_forward.1} parent=11 // pred_check
          %p193 = pneg %p37
        $region14: #{rxt_forward.1} parent=11 // pred_check_branch
          %195 = sbr.rel (%p193) target = $region16
        $region15: #{rxt_forward.1} parent=11 // pred_region
          _
        $region16: #{rxt_forward.1} parent=11 // pred_fallthru
          _
        // Predicated region
        $region17: #{rxt_forward.1} parent=11 // pred_check
          %p196 = pneg %p58
        $region18: #{rxt_forward.1} parent=11 // pred_check_branch
          %198 = sbr.rel (%p196) target = $region20
        $region19: #{rxt_forward.1} parent=11 // pred_region
          _
        $region20: #{rxt_forward.1} parent=11 // pred_fallthru
          _
        // Predicated region
        $region21: #{rxt_forward.1} parent=11 // pred_check
          %p199 = pneg %p131
        $region22: #{rxt_forward.1} parent=11 // pred_check_branch
          %201 = sbr.rel (%p199) target = $region24
        $region23: #{rxt_forward.1} parent=11 // pred_region
          %s203 = ssub.s32 3840, 3840
          %204 = vsyncadd [#allocation6], %s203
          %s205 = sshll.u32 [#allocation5], 4
          %s206 = int_to_ptr.vmem [resolvable:$true] %s205
          %211 = dma.hbm_to_vmem [thread:$0]  %s4, 3840, %s206, [#allocation6], 128, 128, 8
        $region24: #{rxt_forward.1} parent=11 // pred_fallthru
          _
        // Predicated region
        $region25: #{rxt_forward.1} parent=11 // pred_check
          %p212 = pneg %p152
        $region26: #{rxt_forward.1} parent=11 // pred_check_branch
          %214 = sbr.rel (%p212) target = $region28
        $region27: #{rxt_forward.1} parent=11 // pred_region
          _
        $region28: #{rxt_forward.1} parent=11 // pred_fallthru
          _
      $region12: #{rxt_forward.1} parent=5 // pred_fallthru
        _
      %p215 = scmp.lt.s32.totalorder %s16, 2
      // Predicated region
      $region29: #{rxt_forward.1} parent=5 // pred_check
        %p216 = pneg %p215
      $region30: #{rxt_forward.1} parent=5 // pred_check_branch
        %218 = sbr.rel (%p216) target = $region32
      $region31: #{rxt_forward.1} parent=5 // pred_region
        // Predicated region
        $region33: #{rxt_forward.1} parent=31 // pred_check
          %p219 = pneg %p78
        $region34: #{rxt_forward.1} parent=31 // pred_check_branch
          %221 = sbr.rel (%p219) target = $region36
        $region35: #{rxt_forward.1} parent=31 // pred_region
          %p222 = scmp.lt.s32.totalorder %s16, 1
          %s223 = scalar_select %p222, %s16, 1
          %s224 = smul.addr %s223, 8
          %s225 = scalar_lea.vmem %s2, %s224
        $region36: #{rxt_forward.1} parent=31 // pred_fallthru
          _
        // Predicated region
        $region37: #{rxt_forward.1} parent=31 // pred_check
          %p226 = pneg %p104
        $region38: #{rxt_forward.1} parent=31 // pred_check_branch
          %228 = sbr.rel (%p226) target = $region40
        $region39: #{rxt_forward.1} parent=31 // pred_region
          %s229 = sand.u32 %s94, 1
          %s230 = scalar_lea.sflag [#allocation4], %s229
          %s231 = sand.u32 %s94, 1
          %s232 = smul.addr %s231, 304
          %s233 = scalar_lea.vmem [#allocation3], %s232
          %s234 = smul.u32 38, %s16
          %s236 = ssub.s32 4864, 4864
          %237 = vsyncadd %s230, %s236
          %s238 = smul.addr %s234, 128
          %s239 = scalar_lea.hbm %s3, %s238
          %s240 = sshll.u32 %s233, 4
          %s241 = int_to_ptr.vmem [resolvable:$true] %s240
          %246 = dma.hbm_to_vmem [thread:$0]  %s239, 4864, %s241, %s230, 128, 128, 8
        $region40: #{rxt_forward.1} parent=31 // pred_fallthru
          _
      $region32: #{rxt_forward.1} parent=5 // pred_fallthru
        _
      %p247 = scmp.le.s32.totalorder 1, %s16
      %p248 = scmp.lt.s32.totalorder %s16, 3
      %p249 = pnand %p247, %p248
      %p250 = pneg %p249
      // Predicated region
      $region41: #{rxt_forward.1} parent=5 // pred_check
        _
      $region42: #{rxt_forward.1} parent=5 // pred_check_branch
        %252 = sbr.rel (%p249) target = $region44
      $region43: #{rxt_forward.1} parent=5 // pred_region
        %s253 = ssub.s32 %s16, 1
        %s254 = sand.u32 %s97, 1
        %s255 = scalar_lea.sflag [#allocation4], %s254
        %s256 = sand.u32 %s97, 1
        %s257 = smul.addr %s256, 304
        %s258 = scalar_lea.vmem [#allocation3], %s257
        // Predicated region
        $region45: #{rxt_forward.1} parent=43 // pred_check
          %p259 = pneg %p110
        $region46: #{rxt_forward.1} parent=43 // pred_check_branch
          %261 = sbr.rel (%p259) target = $region48
        $region47: #{rxt_forward.1} parent=43 // pred_region
          %262 = dma.done %s255, 4864
        $region48: #{rxt_forward.1} parent=43 // pred_fallthru
          _
        // Predicated region
        $region49: #{rxt_forward.1} parent=43 // pred_check
          %p263 = pneg %p131
        $region50: #{rxt_forward.1} parent=43 // pred_check_branch
          %265 = sbr.rel (%p263) target = $region52
        $region51: #{rxt_forward.1} parent=43 // pred_region
          %266 = dma.done [#allocation6], 3840
        $region52: #{rxt_forward.1} parent=43 // pred_fallthru
          _
        %p267 = pneg %p37
        %p268 = pneg %p34
        %p269 = pneg %p58
        %p270 = pneg %p55
        %p271 = scmp.lt.s32.totalorder %s21, 1
        %s272 = scalar_select %p271, %s21, 1
        %s273 = smul.addr %s272, 8
        %s274 = scalar_lea.vmem %s2, %s273
        %p275 = pneg %p84
        %p276 = pneg %p81
        %s277 = sand.u32 %s97, 1
        %s278 = scalar_lea.sflag [#allocation4], %s277
        %s279 = sand.u32 %s97, 1
        %s280 = smul.addr %s279, 304
        %s281 = scalar_lea.vmem [#allocation3], %s280
        %p282 = pneg %p110
        %p283 = pneg %p107
        %p284 = pneg %p131
        %p285 = pneg %p128
        %p286 = pneg %p152
        %p287 = pneg %p149
        %p288 = pneg %p178
        %p289 = pneg %p175
        %s290 = smul.u32 2, %s21
        %p291 = scmp.lt.s32.totalorder %s290, 3
        %s292 = scalar_select %p291, %s290, 3
        %s293 = smul.addr %s292, 8
        %s294 = scalar_lea.vmem %s6, %s293
        %p295 = scmp.lt.s32.totalorder %s21, 1
        %s296 = scalar_select %p295, %s21, 1
        %s297 = smul.addr %s296, 8
        %s298 = scalar_lea.vmem %s2, %s297
        %s299 = smul.u32 38, %s21
        %s300 = smul.u32 2, %s21
        %p301 = scmp.lt.s32.totalorder %s300, 3
        %s302 = scalar_select %p301, %s300, 3
        %s303 = smul.addr %s302, 8
        %s304 = scalar_lea.vmem %s6, %s303
        %s305 = smul.u32 2, %s21
        %p306 = scmp.eq.s32.totalorder %s21, 0
        // Predicated region
        $region53: #{rxt_forward.1} parent=43 // pred_check
          %p307 = pneg %p306
        $region54: #{rxt_forward.1} parent=43 // pred_check_branch
          %309 = sbr.rel (%p307) target = $region56
        $region55: #{rxt_forward.1} parent=43 // pred_region
          %v310 = vld [vmem:[%s0] sm:$0xff]
          %v311 = vld [vmem:[%s0 + $0x8] sm:$0xff]
          %v312 = vlaneseq
          %v313 = vand.u32 %v312, 127
          %314 = vset.pattern.permute.xlu0 0
          %315 = vperm.xlu0 %314, %v310
          %v316 = vpop.permute.xlu0 %315
          %317 = vset.pattern.permute.xlu0 0
          %318 = vperm.xlu0 %317, %v311
          %v319 = vpop.permute.xlu0 %318
          %vm320 = vcmp.eq.s32.totalorder %v316, %v313
          %vm321 = vcmp.eq.s32.totalorder %v319, %v313
          %v322 = vsel %vm320, 1, 0
          %v323 = vsel %vm321, 1, 0
          %v324 = vcvt.s32.f32 %v322
          %v325 = vcvt.s32.f32 %v323
          %v326 = vld [vmem:[%s1] sm:$0xff]
          %v327 = vld [vmem:[%s1 + $0x8] sm:$0xff]
          %v328 = vld [vmem:[%s1 + $0x10] sm:$0xff]
          %v329 = vld [vmem:[%s1 + $0x18] sm:$0xff]
          %v330 = vld [vmem:[%s1 + $0x20] sm:$0xff]
          %v331 = vld [vmem:[%s1 + $0x28] sm:$0xff]
          %v332 = vld [vmem:[%s1 + $0x30] sm:$0xff]
          %v333 = vld [vmem:[%s1 + $0x38] sm:$0xff]
          %v334 = vld [vmem:[%s1 + $0x40] sm:$0xff]
          %v335 = vld [vmem:[%s1 + $0x48] sm:$0xff]
          %v336 = vld [vmem:[%s1 + $0x50] sm:$0xff]
          %v337 = vld [vmem:[%s1 + $0x58] sm:$0xff]
          %v338 = vld [vmem:[%s1 + $0x60] sm:$0xf]
          %vm339 = vcmask 818176
          %v341 = vsel %vm339, %v324, 0
          %v344 = vsel %vm339, %v325, 0
          %vm346 = vcmask 1043456
          %v348 = vsel %vm346, %v338, 0
          %350 = vmatprep.subr.mxu0 0.0
          %351 = vmatpush1.msra.mxu0 0.0
          %352 = vmatprep.subr.mxu0 0.0
          %353 = vmatpush1.msra.mxu0 0.0
          %354 = vmatprep.subr.mxu0 0.0
          %355 = vmatpush1.msra.mxu0 0.0
          %356 = vmatprep.subr.mxu0 0.0
          %357 = vmatpush1.msra.mxu0 %v348
          %358 = vmatprep.subr.mxu0 0.0
          %359 = vmatpush1.msra.mxu0 %v337
          %360 = vmatprep.subr.mxu0 0.0
          %361 = vmatpush1.msra.mxu0 %v336
          %362 = vmatprep.subr.mxu0 0.0
          %363 = vmatpush1.msra.mxu0 %v335
          %364 = vmatprep.subr.mxu0 0.0
          %365 = vmatpush1.msra.mxu0 %v334
          %366 = vmatprep.subr.mxu0 0.0
          %367 = vmatpush1.msra.mxu0 %v333
          %368 = vmatprep.subr.mxu0 0.0
          %369 = vmatpush1.msra.mxu0 %v332
          %370 = vmatprep.subr.mxu0 0.0
          %371 = vmatpush1.msra.mxu0 %v331
          %372 = vmatprep.subr.mxu0 0.0
          %373 = vmatpush1.msra.mxu0 %v330
          %374 = vmatprep.subr.mxu0 0.0
          %375 = vmatpush1.msra.mxu0 %v329
          %376 = vmatprep.subr.mxu0 0.0
          %377 = vmatpush1.msra.mxu0 %v328
          %378 = vmatprep.subr.mxu0 0.0
          %379 = vmatpush1.msra.mxu0 %v327
          %380 = vmatprep.subr.mxu0 0.0
          %381 = vmatpush1.msra.mxu0 %v326
          %382 = vmatprep.subr.mxu0 0.0
          %383 = vmatpush2.msra.mxu0 0.0
          %384 = vmatprep.subr.mxu0 0.0
          %385 = vmatpush2.msra.mxu0 0.0
          %386 = vmatprep.subr.mxu0 0.0
          %387 = vmatpush2.msra.mxu0 0.0
          %388 = vmatprep.subr.mxu0 0.0
          %389 = vmatpush2.msra.mxu0 0.0
          %390 = vmatprep.subr.mxu0 0.0
          %391 = vmatpush2.msra.mxu0 0.0
          %392 = vmatprep.subr.mxu0 0.0
          %393 = vmatpush2.msra.mxu0 0.0
          %394 = vmatprep.subr.mxu0 0.0
          %395 = vmatpush2.msra.mxu0 0.0
          %396 = vmatprep.subr.mxu0 0.0
          %397 = vmatpush2.msra.mxu0 0.0
          %398 = vmatprep.subr.mxu0 0.0
          %399 = vmatpush2.msra.mxu0 0.0
          %400 = vmatprep.subr.mxu0 0.0
          %401 = vmatpush2.msra.mxu0 0.0
          %402 = vmatprep.subr.mxu0 0.0
          %403 = vmatpush2.msra.mxu0 0.0
          %404 = vmatprep.subr.mxu0 0.0
          %405 = vmatpush2.msra.mxu0 0.0
          %406 = vmatprep.subr.mxu0 0.0
          %407 = vmatpush2.msra.mxu0 0.0
          %408 = vmatprep.subr.mxu0 0.0
          %409 = vmatpush2.msra.mxu0 0.0
          %410 = vmatprep.subr.mxu0 0.0
          %411 = vmatpush2.msra.mxu0 0.0
          %412 = vmatprep.subr.mxu0 0.0
          %413 = vmatpush2.msra.mxu0 0.0
          %414 = vmatprep.mubr.f32.mxu0 0.0
          %415 = vmatmul.mubr.f32.gmra.mxu0 %v341
          %v416 = vpop.f32.mrf.mxu0
          %v417 = vadd.f32 0.0, %v416
          %v418 = vpop.f32.mrf.mxu0
          %419 = vmatprep.mubr.f32.mxu0 0.0
          %420 = vmatmul.mubr.f32.gmra.mxu0 %v344
          %v421 = vpop.f32.mrf.mxu0
          %v422 = vadd.f32 0.0, %v421
          %v423 = vpop.f32.mrf.mxu0
          %424 = vdwg.mxu0
          %vm425 = vcmask 261120
          %426 = vst.msk [vmem:[#allocation2] sm:$0xff] %vm425, %v417
          %427 = vst.msk [vmem:[#allocation2 + $0x8] sm:$0xff] %vm425, %v422
        $region56: #{rxt_forward.1} parent=43 // pred_fallthru
          _
        %v428 = vld [vmem:[#allocation2] sm:$0xff]
        %v429 = vld [vmem:[#allocation2 + $0x8] sm:$0xff]
        %v430 = vld [vmem:[#allocation5] sm:$0xff]
        %v431 = vld [vmem:[#allocation5 + $0x8] sm:$0xff]
        %v432 = vld [vmem:[#allocation5 + $0x10] sm:$0xff]
        %v433 = vld [vmem:[#allocation5 + $0x18] sm:$0xff]
        %v434 = vld [vmem:[#allocation5 + $0x20] sm:$0xff]
        %v435 = vld [vmem:[#allocation5 + $0x28] sm:$0xff]
        %v436 = vld [vmem:[#allocation5 + $0x30] sm:$0xff]
        %v437 = vld [vmem:[#allocation5 + $0x38] sm:$0xff]
        %v438 = vld [vmem:[#allocation5 + $0x40] sm:$0xff]
        %v439 = vld [vmem:[#allocation5 + $0x48] sm:$0xff]
        %v440 = vld [vmem:[#allocation5 + $0x50] sm:$0xff]
        %v441 = vld [vmem:[#allocation5 + $0x58] sm:$0xff]
        %v442 = vld [vmem:[#allocation5 + $0x60] sm:$0xff]
        %v443 = vld [vmem:[#allocation5 + $0x68] sm:$0xff]
        %v444 = vld [vmem:[#allocation5 + $0x70] sm:$0xff]
        %v445 = vld [vmem:[#allocation5 + $0x78] sm:$0xff]
        %v446 = vld [vmem:[#allocation5 + $0x80] sm:$0xff]
        %v447 = vld [vmem:[#allocation5 + $0x88] sm:$0xff]
        %v448 = vld [vmem:[#allocation5 + $0x90] sm:$0xff]
        %v449 = vld [vmem:[#allocation5 + $0x98] sm:$0xff]
        %v450 = vld [vmem:[#allocation5 + $0xa0] sm:$0xff]
        %v451 = vld [vmem:[#allocation5 + $0xa8] sm:$0xff]
        %v452 = vld [vmem:[#allocation5 + $0xb0] sm:$0xff]
        %v453 = vld [vmem:[#allocation5 + $0xb8] sm:$0xff]
        %v454 = vld [vmem:[#allocation5 + $0xc0] sm:$0xff]
        %v455 = vld [vmem:[#allocation5 + $0xc8] sm:$0xff]
        %v456 = vld [vmem:[#allocation5 + $0xd0] sm:$0xff]
        %v457 = vld [vmem:[#allocation5 + $0xd8] sm:$0xff]
        %v458 = vld [vmem:[#allocation5 + $0xe0] sm:$0xff]
        %v459 = vld [vmem:[#allocation5 + $0xe8] sm:$0xff]
        %v460 = vld [vmem:[%s298] sm:$0xff]
        %v461 = vld [vmem:[%s258 + $0x120] sm:$0x1]
        %v462 = vmul.f32 %v428, %v428
        %v463 = vmul.f32 %v429, %v429
        %vm464 = vcmask 261120
        %v465 = vsel %vm464, %v462, 0.0
        %466 = vadd.xlane.f32.xlu0 %v465
        %v467 = vpop.xlane.xlu0 %466
        %v468 = vsel %vm464, %v463, 0.0
        %469 = vadd.xlane.f32.xlu0 %v468
        %v470 = vpop.xlane.xlu0 %469
        %v471 = vrcp.pop 32.0
        %v472 = vmul.f32 %v467, %v471
        %v473 = vmul.f32 %v470, %v471
        %v474 = vadd.f32 %v472, 1.1920929e-07
        %v475 = vadd.f32 %v473, 1.1920929e-07
        %v476 = vrsqrt.pop %v474
        %v477 = vrsqrt.pop %v475
        %v478 = vmul.f32 %v428, %v476
        %v479 = vmul.f32 %v429, %v477
        %v480 = vlaneseq
        %v481 = vshrl.u32 %v480, 7
        %v482 = vsub.s32 0, %v481
        %v483 = vrot.slane %v461, %v482
        %v484 = vmul.f32 %v478, %v483
        %v485 = vmul.f32 %v479, %v483
        %v486 = vld [vmem:[%s258] sm:$0xff]
        %v487 = vld [vmem:[%s258 + $0x8] sm:$0xff]
        %v488 = vld [vmem:[%s258 + $0x10] sm:$0xff]
        %v489 = vld [vmem:[%s258 + $0x18] sm:$0xff]
        %v490 = vld [vmem:[%s258 + $0x121] sm:$0x1]
        %v491 = vlaneseq
        %v492 = vshrl.u32 %v491, 7
        %v493 = vsub.s32 0, %v492
        %v494 = vrot.slane %v490, %v493
        %v496 = vsel %vm464, %v484, 0
        %v499 = vsel %vm464, %v485, 0
        %501 = vmatprep.subr.mxu0 0.0
        %502 = vmatpush1.msra.mxu0 0.0
        %503 = vmatprep.subr.mxu0 0.0
        %504 = vmatpush1.msra.mxu0 0.0
        %505 = vmatprep.subr.mxu0 0.0
        %506 = vmatpush1.msra.mxu0 0.0
        %507 = vmatprep.subr.mxu0 0.0
        %508 = vmatpush1.msra.mxu0 0.0
        %509 = vmatprep.subr.mxu0 0.0
        %510 = vmatpush1.msra.mxu0 0.0
        %511 = vmatprep.subr.mxu0 0.0
        %512 = vmatpush1.msra.mxu0 0.0
        %513 = vmatprep.subr.mxu0 0.0
        %514 = vmatpush1.msra.mxu0 0.0
        %515 = vmatprep.subr.mxu0 0.0
        %516 = vmatpush1.msra.mxu0 0.0
        %517 = vmatprep.subr.mxu0 0.0
        %518 = vmatpush1.msra.mxu0 0.0
        %519 = vmatprep.subr.mxu0 0.0
        %520 = vmatpush1.msra.mxu0 0.0
        %521 = vmatprep.subr.mxu0 0.0
        %522 = vmatpush1.msra.mxu0 0.0
        %523 = vmatprep.subr.mxu0 0.0
        %524 = vmatpush1.msra.mxu0 0.0
        %525 = vmatprep.subr.mxu0 0.0
        %526 = vmatpush1.msra.mxu0 %v489
        %527 = vmatprep.subr.mxu0 0.0
        %528 = vmatpush1.msra.mxu0 %v488
        %529 = vmatprep.subr.mxu0 0.0
        %530 = vmatpush1.msra.mxu0 %v487
        %531 = vmatprep.subr.mxu0 0.0
        %532 = vmatpush1.msra.mxu0 %v486
        %533 = vmatprep.subr.mxu0 0.0
        %534 = vmatpush2.msra.mxu0 0.0
        %535 = vmatprep.subr.mxu0 0.0
        %536 = vmatpush2.msra.mxu0 0.0
        %537 = vmatprep.subr.mxu0 0.0
        %538 = vmatpush2.msra.mxu0 0.0
        %539 = vmatprep.subr.mxu0 0.0
        %540 = vmatpush2.msra.mxu0 0.0
        %541 = vmatprep.subr.mxu0 0.0
        %542 = vmatpush2.msra.mxu0 0.0
        %543 = vmatprep.subr.mxu0 0.0
        %544 = vmatpush2.msra.mxu0 0.0
        %545 = vmatprep.subr.mxu0 0.0
        %546 = vmatpush2.msra.mxu0 0.0
        %547 = vmatprep.subr.mxu0 0.0
        %548 = vmatpush2.msra.mxu0 0.0
        %549 = vmatprep.subr.mxu0 0.0
        %550 = vmatpush2.msra.mxu0 0.0
        %551 = vmatprep.subr.mxu0 0.0
        %552 = vmatpush2.msra.mxu0 0.0
        %553 = vmatprep.subr.mxu0 0.0
        %554 = vmatpush2.msra.mxu0 0.0
        %555 = vmatprep.subr.mxu0 0.0
        %556 = vmatpush2.msra.mxu0 0.0
        %557 = vmatprep.subr.mxu0 0.0
        %558 = vmatpush2.msra.mxu0 0.0
        %559 = vmatprep.subr.mxu0 0.0
        %560 = vmatpush2.msra.mxu0 0.0
        %561 = vmatprep.subr.mxu0 0.0
        %562 = vmatpush2.msra.mxu0 0.0
        %563 = vmatprep.subr.mxu0 0.0
        %564 = vmatpush2.msra.mxu0 0.0
        %565 = vmatprep.mubr.f32.mxu0 0.0
        %566 = vmatmul.mubr.f32.gmra.mxu0 %v496
        %v567 = vpop.f32.mrf.mxu0
        %v568 = vadd.f32 %v494, %v567
        %v569 = vpop.f32.mrf.mxu0
        %570 = vmatprep.mubr.f32.mxu0 0.0
        %571 = vmatmul.mubr.f32.gmra.mxu0 %v499
        %v572 = vpop.f32.mrf.mxu0
        %v573 = vadd.f32 %v494, %v572
        %v574 = vpop.f32.mrf.mxu0
        %575 = vdwg.mxu0
        %v576 = vmul.f32 %v568, %v430
        %v577 = vmul.f32 %v573, %v431
        %580 = vrot.lane.b32.xlu0 %v568, 124
        %v581 = vpop.permute.xlu0 %580
        %582 = vrot.lane.b32.xlu0 %v573, 124
        %v583 = vpop.permute.xlu0 %582
        %586 = vrot.lane.b32.xlu0 %v568, 4
        %v587 = vpop.permute.xlu0 %586
        %588 = vrot.lane.b32.xlu0 %v573, 4
        %v589 = vpop.permute.xlu0 %588
        %vm592 = vcmask 31744
        %v593 = vsel %vm592, %v581, %v587
        %v594 = vsel %vm592, %v583, %v589
        %vm595 = vcmask 64512
        %v596 = vsel %vm595, %v593, %v581
        %v597 = vsel %vm595, %v594, %v583
        %vm598 = vcmask 97280
        %v599 = vsel %vm598, %v596, %v587
        %v600 = vsel %vm598, %v597, %v589
        %vm601 = vcmask 130048
        %v602 = vsel %vm601, %v599, %v581
        %v603 = vsel %vm601, %v600, %v583
        %vm604 = vcmask 162816
        %v605 = vsel %vm604, %v602, %v587
        %v606 = vsel %vm604, %v603, %v589
        %vm607 = vcmask 195584
        %v608 = vsel %vm607, %v605, %v581
        %v609 = vsel %vm607, %v606, %v583
        %vm610 = vcmask 228352
        %v611 = vsel %vm610, %v608, %v587
        %v612 = vsel %vm610, %v609, %v589
        %v613 = vmul.f32 %v611, %v432
        %v614 = vmul.f32 %v612, %v433
        %v615 = vadd.f32 %v576, %v613
        %v616 = vadd.f32 %v577, %v614
        %619 = vrot.lane.b32.xlu0 %v430, 32
        %v620 = vpop.permute.xlu0 %619
        %621 = vrot.lane.b32.xlu0 %v431, 32
        %v622 = vpop.permute.xlu0 %621
        %v625 = vmul.f32 %v568, %v620
        %v626 = vmul.f32 %v573, %v622
        %627 = vrot.lane.b32.xlu0 %v568, 92
        %v628 = vpop.permute.xlu0 %627
        %629 = vrot.lane.b32.xlu0 %v573, 92
        %v630 = vpop.permute.xlu0 %629
        %633 = vrot.lane.b32.xlu0 %v568, 100
        %v634 = vpop.permute.xlu0 %633
        %635 = vrot.lane.b32.xlu0 %v573, 100
        %v636 = vpop.permute.xlu0 %635
        %v639 = vsel %vm592, %v628, %v634
        %v640 = vsel %vm592, %v630, %v636
        %v641 = vmul.f32 %v639, %v432
        %v642 = vmul.f32 %v640, %v433
        %645 = vrot.lane.b32.xlu0 %v641, 32
        %v646 = vpop.permute.xlu0 %645
        %647 = vrot.lane.b32.xlu0 %v642, 32
        %v648 = vpop.permute.xlu0 %647
        %v651 = vadd.f32 %v625, %v646
        %v652 = vadd.f32 %v626, %v648
        %v653 = vld [vmem:[%s5] sm:$0x1]
        %v654 = vld [vmem:[%s258 + $0x20] sm:$0xff]
        %v655 = vld [vmem:[%s258 + $0x28] sm:$0xff]
        %v656 = vld [vmem:[%s258 + $0x30] sm:$0xff]
        %v657 = vld [vmem:[%s258 + $0x38] sm:$0xff]
        %v658 = vld [vmem:[%s258 + $0x122] sm:$0x1]
        %661 = vrot.lane.b32.xlu0 %v651, 96
        %v662 = vpop.permute.xlu0 %661
        %663 = vrot.lane.b32.xlu0 %v652, 96
        %v664 = vpop.permute.xlu0 %663
        %667 = vrot.lane.b32.xlu0 %v651, 104
        %v668 = vpop.permute.xlu0 %667
        %669 = vrot.lane.b32.xlu0 %v652, 104
        %v670 = vpop.permute.xlu0 %669
        %673 = vrot.lane.b32.xlu0 %v651, 112
        %v674 = vpop.permute.xlu0 %673
        %675 = vrot.lane.b32.xlu0 %v652, 112
        %v676 = vpop.permute.xlu0 %675
        %679 = vrot.lane.b32.xlu0 %v651, 120
        %v680 = vpop.permute.xlu0 %679
        %681 = vrot.lane.b32.xlu0 %v652, 120
        %v682 = vpop.permute.xlu0 %681
        %v685 = vsel %vm595, %v662, %v668
        %v686 = vsel %vm595, %v664, %v670
        %v687 = vsel %vm601, %v685, %v674
        %v688 = vsel %vm601, %v686, %v676
        %v689 = vsel %vm607, %v687, %v680
        %v690 = vsel %vm607, %v688, %v682
        %v691 = vmul.f32 %v689, %v434
        %v692 = vmul.f32 %v690, %v435
        %v693 = vmul.f32 %v689, %v436
        %v694 = vmul.f32 %v690, %v437
        %v695 = vmul.f32 %v689, %v438
        %v696 = vmul.f32 %v690, %v439
        %v697 = vmul.f32 %v689, %v440
        %v698 = vmul.f32 %v690, %v441
        %699 = vrot.lane.b32.xlu0 %v568, 88
        %v700 = vpop.permute.xlu0 %699
        %701 = vrot.lane.b32.xlu0 %v573, 88
        %v702 = vpop.permute.xlu0 %701
        %705 = vrot.lane.b32.xlu0 %v568, 96
        %v706 = vpop.permute.xlu0 %705
        %707 = vrot.lane.b32.xlu0 %v573, 96
        %v708 = vpop.permute.xlu0 %707
        %711 = vrot.lane.b32.xlu0 %v568, 104
        %v712 = vpop.permute.xlu0 %711
        %713 = vrot.lane.b32.xlu0 %v573, 104
        %v714 = vpop.permute.xlu0 %713
        %717 = vrot.lane.b32.xlu0 %v568, 112
        %v718 = vpop.permute.xlu0 %717
        %719 = vrot.lane.b32.xlu0 %v573, 112
        %v720 = vpop.permute.xlu0 %719
        %v723 = vsel %vm595, %v700, %v706
        %v724 = vsel %vm595, %v702, %v708
        %v725 = vsel %vm601, %v723, %v712
        %v726 = vsel %vm601, %v724, %v714
        %v727 = vsel %vm607, %v725, %v718
        %v728 = vsel %vm607, %v726, %v720
        %v729 = vmul.f32 %v727, %v434
        %v730 = vmul.f32 %v728, %v435
        %v731 = vmul.f32 %v727, %v436
        %v732 = vmul.f32 %v728, %v437
        %v733 = vmul.f32 %v727, %v438
        %v734 = vmul.f32 %v728, %v439
        %v735 = vmul.f32 %v727, %v440
        %v736 = vmul.f32 %v728, %v441
        %v738 = vsel %vm464, %v615, 0
        %v741 = vsel %vm464, %v616, 0
        %v744 = vsel %vm464, %v691, 0
        %v747 = vsel %vm464, %v692, 0
        %v750 = vsel %vm464, %v693, 0
        %v753 = vsel %vm464, %v694, 0
        %v756 = vsel %vm464, %v695, 0
        %v759 = vsel %vm464, %v696, 0
        %v762 = vsel %vm464, %v697, 0
        %v765 = vsel %vm464, %v698, 0
        %767 = vmatprep.subr.mxu0 0.0
        %768 = vmatpush1.xpose.msra.mxu0 0.0
        %769 = vmatprep.subr.mxu0 0.0
        %770 = vmatpush1.xpose.msra.mxu0 0.0
        %771 = vmatprep.subr.mxu0 0.0
        %772 = vmatpush1.xpose.msra.mxu0 0.0
        %773 = vmatprep.subr.mxu0 0.0
        %774 = vmatpush1.xpose.msra.mxu0 0.0
        %775 = vmatprep.subr.mxu0 0.0
        %776 = vmatpush1.xpose.msra.mxu0 0.0
        %777 = vmatprep.subr.mxu0 0.0
        %778 = vmatpush1.xpose.msra.mxu0 0.0
        %779 = vmatprep.subr.mxu0 0.0
        %780 = vmatpush1.xpose.msra.mxu0 0.0
        %781 = vmatprep.subr.mxu0 0.0
        %782 = vmatpush1.xpose.msra.mxu0 0.0
        %783 = vmatprep.subr.mxu0 0.0
        %784 = vmatpush1.xpose.msra.mxu0 %v765
        %785 = vmatprep.subr.mxu0 0.0
        %786 = vmatpush1.xpose.msra.mxu0 %v762
        %787 = vmatprep.subr.mxu0 0.0
        %788 = vmatpush1.xpose.msra.mxu0 %v759
        %789 = vmatprep.subr.mxu0 0.0
        %790 = vmatpush1.xpose.msra.mxu0 %v756
        %791 = vmatprep.subr.mxu0 0.0
        %792 = vmatpush1.xpose.msra.mxu0 %v753
        %793 = vmatprep.subr.mxu0 0.0
        %794 = vmatpush1.xpose.msra.mxu0 %v750
        %795 = vmatprep.subr.mxu0 0.0
        %796 = vmatpush1.xpose.msra.mxu0 %v747
        %797 = vmatprep.subr.mxu0 0.0
        %798 = vmatpush1.xpose.msra.mxu0 %v744
        %799 = vmatprep.subr.mxu0 0.0
        %800 = vmatpush2.xpose.msra.mxu0 0.0
        %801 = vmatprep.subr.mxu0 0.0
        %802 = vmatpush2.xpose.msra.mxu0 0.0
        %803 = vmatprep.subr.mxu0 0.0
        %804 = vmatpush2.xpose.msra.mxu0 0.0
        %805 = vmatprep.subr.mxu0 0.0
        %806 = vmatpush2.xpose.msra.mxu0 0.0
        %807 = vmatprep.subr.mxu0 0.0
        %808 = vmatpush2.xpose.msra.mxu0 0.0
        %809 = vmatprep.subr.mxu0 0.0
        %810 = vmatpush2.xpose.msra.mxu0 0.0
        %811 = vmatprep.subr.mxu0 0.0
        %812 = vmatpush2.xpose.msra.mxu0 0.0
        %813 = vmatprep.subr.mxu0 0.0
        %814 = vmatpush2.xpose.msra.mxu0 0.0
        %815 = vmatprep.subr.mxu0 0.0
        %816 = vmatpush2.xpose.msra.mxu0 0.0
        %817 = vmatprep.subr.mxu0 0.0
        %818 = vmatpush2.xpose.msra.mxu0 0.0
        %819 = vmatprep.subr.mxu0 0.0
        %820 = vmatpush2.xpose.msra.mxu0 0.0
        %821 = vmatprep.subr.mxu0 0.0
        %822 = vmatpush2.xpose.msra.mxu0 0.0
        %823 = vmatprep.subr.mxu0 0.0
        %824 = vmatpush2.xpose.msra.mxu0 0.0
        %825 = vmatprep.subr.mxu0 0.0
        %826 = vmatpush2.xpose.msra.mxu0 0.0
        %827 = vmatprep.subr.mxu0 0.0
        %828 = vmatpush2.xpose.msra.mxu0 0.0
        %829 = vmatprep.subr.mxu0 0.0
        %830 = vmatpush2.xpose.msra.mxu0 0.0
        %831 = vmatprep.mubr.f32.mxu0 0.0
        %832 = vmatmul.mubr.f32.gmra.mxu0 %v738
        %v833 = vpop.f32.mrf.mxu0
        %v834 = vadd.f32 0.0, %v833
        %v835 = vpop.f32.mrf.mxu0
        %836 = vmatprep.mubr.f32.mxu0 0.0
        %837 = vmatmul.mubr.f32.gmra.mxu0 %v741
        %v838 = vpop.f32.mrf.mxu0
        %v839 = vadd.f32 0.0, %v838
        %v840 = vpop.f32.mrf.mxu0
        %841 = vdwg.mxu0
        %v842 = vmul.f32 %v834, 0.35355338
        %v843 = vmul.f32 %v839, 0.35355338
        %v845 = vlaneseq
        %v846 = vshrl.u32 %v845, 7
        %v847 = vsub.s32 0, %v846
        %v848 = vrot.slane %v653, %v847
        %v850 = vadd.f32 %v842, %v848
        %v851 = vadd.f32 %v843, %v848
        %vm852 = vcmask 523264
        %v853 = vsel %vm852, %v850, -inf
        %854 = vmax.xlane.f32.xlu0 %v853
        %v855 = vpop.xlane.xlu0 %854
        %v856 = vsel %vm852, %v851, -inf
        %857 = vmax.xlane.f32.xlu0 %v856
        %v858 = vpop.xlane.xlu0 %857
        %v859 = vsub.f32 %v850, %v855
        %v860 = vsub.f32 %v851, %v858
        %v861 = vmul.f32 %v859, 1.442695
        %v862 = vpow.pop %v861
        %v863 = vmul.f32 %v860, 1.442695
        %v864 = vpow.pop %v863
        %v866 = vsel %vm852, %v862, 0
        %v869 = vsel %vm852, %v864, 0
        %871 = vmatprep.subr.mxu0 0.0
        %872 = vmatpush1.msra.mxu0 0.0
        %873 = vmatprep.subr.mxu0 0.0
        %874 = vmatpush1.msra.mxu0 0.0
        %875 = vmatprep.subr.mxu0 0.0
        %876 = vmatpush1.msra.mxu0 0.0
        %877 = vmatprep.subr.mxu0 0.0
        %878 = vmatpush1.msra.mxu0 0.0
        %879 = vmatprep.subr.mxu0 0.0
        %880 = vmatpush1.msra.mxu0 0.0
        %881 = vmatprep.subr.mxu0 0.0
        %882 = vmatpush1.msra.mxu0 0.0
        %883 = vmatprep.subr.mxu0 0.0
        %884 = vmatpush1.msra.mxu0 0.0
        %885 = vmatprep.subr.mxu0 0.0
        %886 = vmatpush1.msra.mxu0 0.0
        %887 = vmatprep.subr.mxu0 0.0
        %888 = vmatpush1.msra.mxu0 %v449
        %889 = vmatprep.subr.mxu0 0.0
        %890 = vmatpush1.msra.mxu0 %v448
        %891 = vmatprep.subr.mxu0 0.0
        %892 = vmatpush1.msra.mxu0 %v447
        %893 = vmatprep.subr.mxu0 0.0
        %894 = vmatpush1.msra.mxu0 %v446
        %895 = vmatprep.subr.mxu0 0.0
        %896 = vmatpush1.msra.mxu0 %v445
        %897 = vmatprep.subr.mxu0 0.0
        %898 = vmatpush1.msra.mxu0 %v444
        %899 = vmatprep.subr.mxu0 0.0
        %900 = vmatpush1.msra.mxu0 %v443
        %901 = vmatprep.subr.mxu0 0.0
        %902 = vmatpush1.msra.mxu0 %v442
        %903 = vmatprep.subr.mxu0 0.0
        %904 = vmatpush2.msra.mxu0 0.0
        %905 = vmatprep.subr.mxu0 0.0
        %906 = vmatpush2.msra.mxu0 0.0
        %907 = vmatprep.subr.mxu0 0.0
        %908 = vmatpush2.msra.mxu0 0.0
        %909 = vmatprep.subr.mxu0 0.0
        %910 = vmatpush2.msra.mxu0 0.0
        %911 = vmatprep.subr.mxu0 0.0
        %912 = vmatpush2.msra.mxu0 0.0
        %913 = vmatprep.subr.mxu0 0.0
        %914 = vmatpush2.msra.mxu0 0.0
        %915 = vmatprep.subr.mxu0 0.0
        %916 = vmatpush2.msra.mxu0 0.0
        %917 = vmatprep.subr.mxu0 0.0
        %918 = vmatpush2.msra.mxu0 0.0
        %919 = vmatprep.subr.mxu0 0.0
        %920 = vmatpush2.msra.mxu0 0.0
        %921 = vmatprep.subr.mxu0 0.0
        %922 = vmatpush2.msra.mxu0 0.0
        %923 = vmatprep.subr.mxu0 0.0
        %924 = vmatpush2.msra.mxu0 0.0
        %925 = vmatprep.subr.mxu0 0.0
        %926 = vmatpush2.msra.mxu0 0.0
        %927 = vmatprep.subr.mxu0 0.0
        %928 = vmatpush2.msra.mxu0 0.0
        %929 = vmatprep.subr.mxu0 0.0
        %930 = vmatpush2.msra.mxu0 0.0
        %931 = vmatprep.subr.mxu0 0.0
        %932 = vmatpush2.msra.mxu0 0.0
        %933 = vmatprep.subr.mxu0 0.0
        %934 = vmatpush2.msra.mxu0 0.0
        %935 = vmatprep.mubr.f32.mxu0 0.0
        %936 = vmatmul.mubr.f32.gmra.mxu0 %v866
        %v937 = vpop.f32.mrf.mxu0
        %v938 = vadd.f32 0.0, %v937
        %v939 = vpop.f32.mrf.mxu0
        %940 = vmatprep.mubr.f32.mxu0 0.0
        %941 = vmatmul.mubr.f32.gmra.mxu0 %v869
        %v942 = vpop.f32.mrf.mxu0
        %v943 = vadd.f32 0.0, %v942
        %v944 = vpop.f32.mrf.mxu0
        %945 = vdwg.mxu0
        %v946 = vmax.f32 %v938, 1e-30
        %v947 = vmax.f32 %v943, 1e-30
        %v948 = vrcp.pop %v946
        %v949 = vrcp.pop %v947
        %v950 = vmul.f32 %v862, %v948
        %v951 = vmul.f32 %v864, %v949
        %v952 = vmul.f32 %v950, %v450
        %v953 = vmul.f32 %v951, %v451
        %v955 = vsel %vm852, %v952, 0
        %v958 = vsel %vm852, %v953, 0
        %960 = vmatprep.subr.mxu0 0.0
        %961 = vmatpush1.msra.mxu0 0.0
        %962 = vmatprep.subr.mxu0 0.0
        %963 = vmatpush1.msra.mxu0 0.0
        %964 = vmatprep.subr.mxu0 0.0
        %965 = vmatpush1.msra.mxu0 0.0
        %966 = vmatprep.subr.mxu0 0.0
        %967 = vmatpush1.msra.mxu0 0.0
        %968 = vmatprep.subr.mxu0 0.0
        %969 = vmatpush1.msra.mxu0 0.0
        %970 = vmatprep.subr.mxu0 0.0
        %971 = vmatpush1.msra.mxu0 0.0
        %972 = vmatprep.subr.mxu0 0.0
        %973 = vmatpush1.msra.mxu0 0.0
        %974 = vmatprep.subr.mxu0 0.0
        %975 = vmatpush1.msra.mxu0 0.0
        %976 = vmatprep.subr.mxu0 0.0
        %977 = vmatpush1.msra.mxu0 %v736
        %978 = vmatprep.subr.mxu0 0.0
        %979 = vmatpush1.msra.mxu0 %v735
        %980 = vmatprep.subr.mxu0 0.0
        %981 = vmatpush1.msra.mxu0 %v734
        %982 = vmatprep.subr.mxu0 0.0
        %983 = vmatpush1.msra.mxu0 %v733
        %984 = vmatprep.subr.mxu0 0.0
        %985 = vmatpush1.msra.mxu0 %v732
        %986 = vmatprep.subr.mxu0 0.0
        %987 = vmatpush1.msra.mxu0 %v731
        %988 = vmatprep.subr.mxu0 0.0
        %989 = vmatpush1.msra.mxu0 %v730
        %990 = vmatprep.subr.mxu0 0.0
        %991 = vmatpush1.msra.mxu0 %v729
        %992 = vmatprep.subr.mxu0 0.0
        %993 = vmatpush2.msra.mxu0 0.0
        %994 = vmatprep.subr.mxu0 0.0
        %995 = vmatpush2.msra.mxu0 0.0
        %996 = vmatprep.subr.mxu0 0.0
        %997 = vmatpush2.msra.mxu0 0.0
        %998 = vmatprep.subr.mxu0 0.0
        %999 = vmatpush2.msra.mxu0 0.0
        %1000 = vmatprep.subr.mxu0 0.0
        %1001 = vmatpush2.msra.mxu0 0.0
        %1002 = vmatprep.subr.mxu0 0.0
        %1003 = vmatpush2.msra.mxu0 0.0
        %1004 = vmatprep.subr.mxu0 0.0
        %1005 = vmatpush2.msra.mxu0 0.0
        %1006 = vmatprep.subr.mxu0 0.0
        %1007 = vmatpush2.msra.mxu0 0.0
        %1008 = vmatprep.subr.mxu0 0.0
        %1009 = vmatpush2.msra.mxu0 0.0
        %1010 = vmatprep.subr.mxu0 0.0
        %1011 = vmatpush2.msra.mxu0 0.0
        %1012 = vmatprep.subr.mxu0 0.0
        %1013 = vmatpush2.msra.mxu0 0.0
        %1014 = vmatprep.subr.mxu0 0.0
        %1015 = vmatpush2.msra.mxu0 0.0
        %1016 = vmatprep.subr.mxu0 0.0
        %1017 = vmatpush2.msra.mxu0 0.0
        %1018 = vmatprep.subr.mxu0 0.0
        %1019 = vmatpush2.msra.mxu0 0.0
        %1020 = vmatprep.subr.mxu0 0.0
        %1021 = vmatpush2.msra.mxu0 0.0
        %1022 = vmatprep.subr.mxu0 0.0
        %1023 = vmatpush2.msra.mxu0 0.0
        %1024 = vmatprep.mubr.f32.mxu0 0.0
        %1025 = vmatmul.mubr.f32.gmra.mxu0 %v955
        %v1026 = vpop.f32.mrf.mxu0
        %v1027 = vadd.f32 0.0, %v1026
        %v1028 = vpop.f32.mrf.mxu0
        %1029 = vmatprep.mubr.f32.mxu0 0.0
        %1030 = vmatmul.mubr.f32.gmra.mxu0 %v958
        %v1031 = vpop.f32.mrf.mxu0
        %v1032 = vadd.f32 0.0, %v1031
        %v1033 = vpop.f32.mrf.mxu0
        %1034 = vdwg.mxu0
        %v1035 = vlaneseq
        %v1036 = vshrl.u32 %v1035, 7
        %v1037 = vsub.s32 0, %v1036
        %v1038 = vrot.slane %v658, %v1037
        %v1040 = vsel %vm464, %v1027, 0
        %v1043 = vsel %vm464, %v1032, 0
        %1045 = vmatprep.subr.mxu0 0.0
        %1046 = vmatpush1.msra.mxu0 0.0
        %1047 = vmatprep.subr.mxu0 0.0
        %1048 = vmatpush1.msra.mxu0 0.0
        %1049 = vmatprep.subr.mxu0 0.0
        %1050 = vmatpush1.msra.mxu0 0.0
        %1051 = vmatprep.subr.mxu0 0.0
        %1052 = vmatpush1.msra.mxu0 0.0
        %1053 = vmatprep.subr.mxu0 0.0
        %1054 = vmatpush1.msra.mxu0 0.0
        %1055 = vmatprep.subr.mxu0 0.0
        %1056 = vmatpush1.msra.mxu0 0.0
        %1057 = vmatprep.subr.mxu0 0.0
        %1058 = vmatpush1.msra.mxu0 0.0
        %1059 = vmatprep.subr.mxu0 0.0
        %1060 = vmatpush1.msra.mxu0 0.0
        %1061 = vmatprep.subr.mxu0 0.0
        %1062 = vmatpush1.msra.mxu0 0.0
        %1063 = vmatprep.subr.mxu0 0.0
        %1064 = vmatpush1.msra.mxu0 0.0
        %1065 = vmatprep.subr.mxu0 0.0
        %1066 = vmatpush1.msra.mxu0 0.0
        %1067 = vmatprep.subr.mxu0 0.0
        %1068 = vmatpush1.msra.mxu0 0.0
        %1069 = vmatprep.subr.mxu0 0.0
        %1070 = vmatpush1.msra.mxu0 %v657
        %1071 = vmatprep.subr.mxu0 0.0
        %1072 = vmatpush1.msra.mxu0 %v656
        %1073 = vmatprep.subr.mxu0 0.0
        %1074 = vmatpush1.msra.mxu0 %v655
        %1075 = vmatprep.subr.mxu0 0.0
        %1076 = vmatpush1.msra.mxu0 %v654
        %1077 = vmatprep.subr.mxu0 0.0
        %1078 = vmatpush2.msra.mxu0 0.0
        %1079 = vmatprep.subr.mxu0 0.0
        %1080 = vmatpush2.msra.mxu0 0.0
        %1081 = vmatprep.subr.mxu0 0.0
        %1082 = vmatpush2.msra.mxu0 0.0
        %1083 = vmatprep.subr.mxu0 0.0
        %1084 = vmatpush2.msra.mxu0 0.0
        %1085 = vmatprep.subr.mxu0 0.0
        %1086 = vmatpush2.msra.mxu0 0.0
        %1087 = vmatprep.subr.mxu0 0.0
        %1088 = vmatpush2.msra.mxu0 0.0
        %1089 = vmatprep.subr.mxu0 0.0
        %1090 = vmatpush2.msra.mxu0 0.0
        %1091 = vmatprep.subr.mxu0 0.0
        %1092 = vmatpush2.msra.mxu0 0.0
        %1093 = vmatprep.subr.mxu0 0.0
        %1094 = vmatpush2.msra.mxu0 0.0
        %1095 = vmatprep.subr.mxu0 0.0
        %1096 = vmatpush2.msra.mxu0 0.0
        %1097 = vmatprep.subr.mxu0 0.0
        %1098 = vmatpush2.msra.mxu0 0.0
        %1099 = vmatprep.subr.mxu0 0.0
        %1100 = vmatpush2.msra.mxu0 0.0
        %1101 = vmatprep.subr.mxu0 0.0
        %1102 = vmatpush2.msra.mxu0 0.0
        %1103 = vmatprep.subr.mxu0 0.0
        %1104 = vmatpush2.msra.mxu0 0.0
        %1105 = vmatprep.subr.mxu0 0.0
        %1106 = vmatpush2.msra.mxu0 0.0
        %1107 = vmatprep.subr.mxu0 0.0
        %1108 = vmatpush2.msra.mxu0 0.0
        %1109 = vmatprep.mubr.f32.mxu0 0.0
        %1110 = vmatmul.mubr.f32.gmra.mxu0 %v1040
        %v1111 = vpop.f32.mrf.mxu0
        %v1112 = vadd.f32 %v1038, %v1111
        %v1113 = vpop.f32.mrf.mxu0
        %1114 = vmatprep.mubr.f32.mxu0 0.0
        %1115 = vmatmul.mubr.f32.gmra.mxu0 %v1043
        %v1116 = vpop.f32.mrf.mxu0
        %v1117 = vadd.f32 %v1038, %v1116
        %v1118 = vpop.f32.mrf.mxu0
        %1119 = vdwg.mxu0
        %v1120 = vadd.f32 %v428, %v1112
        %v1121 = vadd.f32 %v429, %v1117
        %v1122 = vld [vmem:[%s258 + $0x123] sm:$0x1]
        %v1123 = vmul.f32 %v1120, %v1120
        %v1124 = vmul.f32 %v1121, %v1121
        %v1125 = vsel %vm464, %v1123, 0.0
        %1126 = vadd.xlane.f32.xlu0 %v1125
        %v1127 = vpop.xlane.xlu0 %1126
        %v1128 = vsel %vm464, %v1124, 0.0
        %1129 = vadd.xlane.f32.xlu0 %v1128
        %v1130 = vpop.xlane.xlu0 %1129
        %v1131 = vmul.f32 %v1127, %v471
        %v1132 = vmul.f32 %v1130, %v471
        %v1133 = vadd.f32 %v1131, 1.1920929e-07
        %v1134 = vadd.f32 %v1132, 1.1920929e-07
        %v1135 = vrsqrt.pop %v1133
        %v1136 = vrsqrt.pop %v1134
        %v1137 = vmul.f32 %v1120, %v1135
        %v1138 = vmul.f32 %v1121, %v1136
        %v1139 = vlaneseq
        %v1140 = vshrl.u32 %v1139, 7
        %v1141 = vsub.s32 0, %v1140
        %v1142 = vrot.slane %v1122, %v1141
        %v1143 = vmul.f32 %v1137, %v1142
        %v1144 = vmul.f32 %v1138, %v1142
        %v1145 = vld [vmem:[%s258 + $0x40] sm:$0xff]
        %v1146 = vld [vmem:[%s258 + $0x48] sm:$0xff]
        %v1147 = vld [vmem:[%s258 + $0x50] sm:$0xff]
        %v1148 = vld [vmem:[%s258 + $0x58] sm:$0xff]
        %v1149 = vld [vmem:[%s258 + $0x124] sm:$0x1]
        %v1150 = vlaneseq
        %v1151 = vshrl.u32 %v1150, 7
        %v1152 = vsub.s32 0, %v1151
        %v1153 = vrot.slane %v1149, %v1152
        %v1155 = vsel %vm464, %v1143, 0
        %v1158 = vsel %vm464, %v1144, 0
        %1160 = vmatprep.subr.mxu0 0.0
        %1161 = vmatpush1.msra.mxu0 0.0
        %1162 = vmatprep.subr.mxu0 0.0
        %1163 = vmatpush1.msra.mxu0 0.0
        %1164 = vmatprep.subr.mxu0 0.0
        %1165 = vmatpush1.msra.mxu0 0.0
        %1166 = vmatprep.subr.mxu0 0.0
        %1167 = vmatpush1.msra.mxu0 0.0
        %1168 = vmatprep.subr.mxu0 0.0
        %1169 = vmatpush1.msra.mxu0 0.0
        %1170 = vmatprep.subr.mxu0 0.0
        %1171 = vmatpush1.msra.mxu0 0.0
        %1172 = vmatprep.subr.mxu0 0.0
        %1173 = vmatpush1.msra.mxu0 0.0
        %1174 = vmatprep.subr.mxu0 0.0
        %1175 = vmatpush1.msra.mxu0 0.0
        %1176 = vmatprep.subr.mxu0 0.0
        %1177 = vmatpush1.msra.mxu0 0.0
        %1178 = vmatprep.subr.mxu0 0.0
        %1179 = vmatpush1.msra.mxu0 0.0
        %1180 = vmatprep.subr.mxu0 0.0
        %1181 = vmatpush1.msra.mxu0 0.0
        %1182 = vmatprep.subr.mxu0 0.0
        %1183 = vmatpush1.msra.mxu0 0.0
        %1184 = vmatprep.subr.mxu0 0.0
        %1185 = vmatpush1.msra.mxu0 %v1148
        %1186 = vmatprep.subr.mxu0 0.0
        %1187 = vmatpush1.msra.mxu0 %v1147
        %1188 = vmatprep.subr.mxu0 0.0
        %1189 = vmatpush1.msra.mxu0 %v1146
        %1190 = vmatprep.subr.mxu0 0.0
        %1191 = vmatpush1.msra.mxu0 %v1145
        %1192 = vmatprep.subr.mxu0 0.0
        %1193 = vmatpush2.msra.mxu0 0.0
        %1194 = vmatprep.subr.mxu0 0.0
        %1195 = vmatpush2.msra.mxu0 0.0
        %1196 = vmatprep.subr.mxu0 0.0
        %1197 = vmatpush2.msra.mxu0 0.0
        %1198 = vmatprep.subr.mxu0 0.0
        %1199 = vmatpush2.msra.mxu0 0.0
        %1200 = vmatprep.subr.mxu0 0.0
        %1201 = vmatpush2.msra.mxu0 0.0
        %1202 = vmatprep.subr.mxu0 0.0
        %1203 = vmatpush2.msra.mxu0 0.0
        %1204 = vmatprep.subr.mxu0 0.0
        %1205 = vmatpush2.msra.mxu0 0.0
        %1206 = vmatprep.subr.mxu0 0.0
        %1207 = vmatpush2.msra.mxu0 0.0
        %1208 = vmatprep.subr.mxu0 0.0
        %1209 = vmatpush2.msra.mxu0 0.0
        %1210 = vmatprep.subr.mxu0 0.0
        %1211 = vmatpush2.msra.mxu0 0.0
        %1212 = vmatprep.subr.mxu0 0.0
        %1213 = vmatpush2.msra.mxu0 0.0
        %1214 = vmatprep.subr.mxu0 0.0
        %1215 = vmatpush2.msra.mxu0 0.0
        %1216 = vmatprep.subr.mxu0 0.0
        %1217 = vmatpush2.msra.mxu0 0.0
        %1218 = vmatprep.subr.mxu0 0.0
        %1219 = vmatpush2.msra.mxu0 0.0
        %1220 = vmatprep.subr.mxu0 0.0
        %1221 = vmatpush2.msra.mxu0 0.0
        %1222 = vmatprep.subr.mxu0 0.0
        %1223 = vmatpush2.msra.mxu0 0.0
        %1224 = vmatprep.mubr.f32.mxu0 0.0
        %1225 = vmatmul.mubr.f32.gmra.mxu0 %v1155
        %v1226 = vpop.f32.mrf.mxu0
        %v1227 = vadd.f32 %v1153, %v1226
        %v1228 = vpop.f32.mrf.mxu0
        %1229 = vmatprep.mubr.f32.mxu0 0.0
        %1230 = vmatmul.mubr.f32.gmra.mxu0 %v1158
        %v1231 = vpop.f32.mrf.mxu0
        %v1232 = vadd.f32 %v1153, %v1231
        %v1233 = vpop.f32.mrf.mxu0
        %1234 = vdwg.mxu0
        %v1235 = vmul.f32 %v1227, %v430
        %v1236 = vmul.f32 %v1232, %v431
        %1239 = vrot.lane.b32.xlu0 %v1227, 124
        %v1240 = vpop.permute.xlu0 %1239
        %1241 = vrot.lane.b32.xlu0 %v1232, 124
        %v1242 = vpop.permute.xlu0 %1241
        %1245 = vrot.lane.b32.xlu0 %v1227, 4
        %v1246 = vpop.permute.xlu0 %1245
        %1247 = vrot.lane.b32.xlu0 %v1232, 4
        %v1248 = vpop.permute.xlu0 %1247
        %v1251 = vsel %vm592, %v1240, %v1246
        %v1252 = vsel %vm592, %v1242, %v1248
        %v1253 = vsel %vm595, %v1251, %v1240
        %v1254 = vsel %vm595, %v1252, %v1242
        %v1255 = vsel %vm598, %v1253, %v1246
        %v1256 = vsel %vm598, %v1254, %v1248
        %v1257 = vsel %vm601, %v1255, %v1240
        %v1258 = vsel %vm601, %v1256, %v1242
        %v1259 = vsel %vm604, %v1257, %v1246
        %v1260 = vsel %vm604, %v1258, %v1248
        %v1261 = vsel %vm607, %v1259, %v1240
        %v1262 = vsel %vm607, %v1260, %v1242
        %v1263 = vsel %vm610, %v1261, %v1246
        %v1264 = vsel %vm610, %v1262, %v1248
        %v1265 = vmul.f32 %v1263, %v432
        %v1266 = vmul.f32 %v1264, %v433
        %v1267 = vadd.f32 %v1235, %v1265
        %v1268 = vadd.f32 %v1236, %v1266
        %v1269 = vld [vmem:[%s258 + $0x60] sm:$0xff]
        %v1270 = vld [vmem:[%s258 + $0x68] sm:$0xff]
        %v1271 = vld [vmem:[%s258 + $0x70] sm:$0xff]
        %v1272 = vld [vmem:[%s258 + $0x78] sm:$0xff]
        %v1273 = vld [vmem:[%s258 + $0x125] sm:$0x1]
        %v1274 = vlaneseq
        %v1275 = vshrl.u32 %v1274, 7
        %v1276 = vsub.s32 0, %v1275
        %v1277 = vrot.slane %v1273, %v1276
        %v1279 = vsel %vm464, %v460, 0
        %1281 = vmatprep.subr.mxu0 0.0
        %1282 = vmatpush1.msra.mxu0 0.0
        %1283 = vmatprep.subr.mxu0 0.0
        %1284 = vmatpush1.msra.mxu0 0.0
        %1285 = vmatprep.subr.mxu0 0.0
        %1286 = vmatpush1.msra.mxu0 0.0
        %1287 = vmatprep.subr.mxu0 0.0
        %1288 = vmatpush1.msra.mxu0 0.0
        %1289 = vmatprep.subr.mxu0 0.0
        %1290 = vmatpush1.msra.mxu0 0.0
        %1291 = vmatprep.subr.mxu0 0.0
        %1292 = vmatpush1.msra.mxu0 0.0
        %1293 = vmatprep.subr.mxu0 0.0
        %1294 = vmatpush1.msra.mxu0 0.0
        %1295 = vmatprep.subr.mxu0 0.0
        %1296 = vmatpush1.msra.mxu0 0.0
        %1297 = vmatprep.subr.mxu0 0.0
        %1298 = vmatpush1.msra.mxu0 0.0
        %1299 = vmatprep.subr.mxu0 0.0
        %1300 = vmatpush1.msra.mxu0 0.0
        %1301 = vmatprep.subr.mxu0 0.0
        %1302 = vmatpush1.msra.mxu0 0.0
        %1303 = vmatprep.subr.mxu0 0.0
        %1304 = vmatpush1.msra.mxu0 0.0
        %1305 = vmatprep.subr.mxu0 0.0
        %1306 = vmatpush1.msra.mxu0 %v1272
        %1307 = vmatprep.subr.mxu0 0.0
        %1308 = vmatpush1.msra.mxu0 %v1271
        %1309 = vmatprep.subr.mxu0 0.0
        %1310 = vmatpush1.msra.mxu0 %v1270
        %1311 = vmatprep.subr.mxu0 0.0
        %1312 = vmatpush1.msra.mxu0 %v1269
        %1313 = vmatprep.subr.mxu0 0.0
        %1314 = vmatpush2.msra.mxu0 0.0
        %1315 = vmatprep.subr.mxu0 0.0
        %1316 = vmatpush2.msra.mxu0 0.0
        %1317 = vmatprep.subr.mxu0 0.0
        %1318 = vmatpush2.msra.mxu0 0.0
        %1319 = vmatprep.subr.mxu0 0.0
        %1320 = vmatpush2.msra.mxu0 0.0
        %1321 = vmatprep.subr.mxu0 0.0
        %1322 = vmatpush2.msra.mxu0 0.0
        %1323 = vmatprep.subr.mxu0 0.0
        %1324 = vmatpush2.msra.mxu0 0.0
        %1325 = vmatprep.subr.mxu0 0.0
        %1326 = vmatpush2.msra.mxu0 0.0
        %1327 = vmatprep.subr.mxu0 0.0
        %1328 = vmatpush2.msra.mxu0 0.0
        %1329 = vmatprep.subr.mxu0 0.0
        %1330 = vmatpush2.msra.mxu0 0.0
        %1331 = vmatprep.subr.mxu0 0.0
        %1332 = vmatpush2.msra.mxu0 0.0
        %1333 = vmatprep.subr.mxu0 0.0
        %1334 = vmatpush2.msra.mxu0 0.0
        %1335 = vmatprep.subr.mxu0 0.0
        %1336 = vmatpush2.msra.mxu0 0.0
        %1337 = vmatprep.subr.mxu0 0.0
        %1338 = vmatpush2.msra.mxu0 0.0
        %1339 = vmatprep.subr.mxu0 0.0
        %1340 = vmatpush2.msra.mxu0 0.0
        %1341 = vmatprep.subr.mxu0 0.0
        %1342 = vmatpush2.msra.mxu0 0.0
        %1343 = vmatprep.subr.mxu0 0.0
        %1344 = vmatpush2.msra.mxu0 0.0
        %1345 = vmatprep.mubr.f32.mxu0 0.0
        %1346 = vmatmul.mubr.f32.gmra.mxu0 %v1279
        %v1347 = vpop.f32.mrf.mxu0
        %v1348 = vadd.f32 %v1277, %v1347
        %v1349 = vpop.f32.mrf.mxu0
        %1350 = vdwg.mxu0
        %v1351 = vld [vmem:[%s258 + $0x80] sm:$0xff]
        %v1352 = vld [vmem:[%s258 + $0x88] sm:$0xff]
        %v1353 = vld [vmem:[%s258 + $0x90] sm:$0xff]
        %v1354 = vld [vmem:[%s258 + $0x98] sm:$0xff]
        %v1355 = vld [vmem:[%s258 + $0x126] sm:$0x1]
        %1357 = vrot.lane.b32.xlu0 %v1348, 8
        %v1358 = vpop.permute.xlu0 %1357
        %1360 = vrot.lane.b32.xlu0 %v1348, 16
        %v1361 = vpop.permute.xlu0 %1360
        %1363 = vrot.lane.b32.xlu0 %v1348, 24
        %v1364 = vpop.permute.xlu0 %1363
        %v1366 = vsel %vm595, %v1348, %v1358
        %v1367 = vsel %vm601, %v1366, %v1361
        %v1368 = vsel %vm607, %v1367, %v1364
        %v1369 = vmul.f32 %v1368, %v452
        %v1370 = vmul.f32 %v1368, %v453
        %v1371 = vmul.f32 %v1368, %v454
        %v1372 = vmul.f32 %v1368, %v455
        %1373 = vrot.lane.b32.xlu0 %v1348, 120
        %v1374 = vpop.permute.xlu0 %1373
        %v1376 = vsel %vm595, %v1374, %v1348
        %v1377 = vsel %vm601, %v1376, %v1358
        %v1378 = vsel %vm607, %v1377, %v1361
        %v1379 = vmul.f32 %v1378, %v452
        %v1380 = vmul.f32 %v1378, %v453
        %v1381 = vmul.f32 %v1378, %v454
        %v1382 = vmul.f32 %v1378, %v455
        %v1384 = vsel %vm464, %v1267, 0
        %v1387 = vsel %vm464, %v1268, 0
        %v1390 = vsel %vm464, %v1369, 0
        %v1393 = vsel %vm464, %v1370, 0
        %v1396 = vsel %vm464, %v1371, 0
        %v1399 = vsel %vm464, %v1372, 0
        %1401 = vmatprep.subr.mxu0 0.0
        %1402 = vmatpush1.xpose.msra.mxu0 0.0
        %1403 = vmatprep.subr.mxu0 0.0
        %1404 = vmatpush1.xpose.msra.mxu0 0.0
        %1405 = vmatprep.subr.mxu0 0.0
        %1406 = vmatpush1.xpose.msra.mxu0 0.0
        %1407 = vmatprep.subr.mxu0 0.0
        %1408 = vmatpush1.xpose.msra.mxu0 0.0
        %1409 = vmatprep.subr.mxu0 0.0
        %1410 = vmatpush1.xpose.msra.mxu0 0.0
        %1411 = vmatprep.subr.mxu0 0.0
        %1412 = vmatpush1.xpose.msra.mxu0 0.0
        %1413 = vmatprep.subr.mxu0 0.0
        %1414 = vmatpush1.xpose.msra.mxu0 0.0
        %1415 = vmatprep.subr.mxu0 0.0
        %1416 = vmatpush1.xpose.msra.mxu0 0.0
        %1417 = vmatprep.subr.mxu0 0.0
        %1418 = vmatpush1.xpose.msra.mxu0 0.0
        %1419 = vmatprep.subr.mxu0 0.0
        %1420 = vmatpush1.xpose.msra.mxu0 0.0
        %1421 = vmatprep.subr.mxu0 0.0
        %1422 = vmatpush1.xpose.msra.mxu0 0.0
        %1423 = vmatprep.subr.mxu0 0.0
        %1424 = vmatpush1.xpose.msra.mxu0 0.0
        %1425 = vmatprep.subr.mxu0 0.0
        %1426 = vmatpush1.xpose.msra.mxu0 %v1399
        %1427 = vmatprep.subr.mxu0 0.0
        %1428 = vmatpush1.xpose.msra.mxu0 %v1396
        %1429 = vmatprep.subr.mxu0 0.0
        %1430 = vmatpush1.xpose.msra.mxu0 %v1393
        %1431 = vmatprep.subr.mxu0 0.0
        %1432 = vmatpush1.xpose.msra.mxu0 %v1390
        %1433 = vmatprep.subr.mxu0 0.0
        %1434 = vmatpush2.xpose.msra.mxu0 0.0
        %1435 = vmatprep.subr.mxu0 0.0
        %1436 = vmatpush2.xpose.msra.mxu0 0.0
        %1437 = vmatprep.subr.mxu0 0.0
        %1438 = vmatpush2.xpose.msra.mxu0 0.0
        %1439 = vmatprep.subr.mxu0 0.0
        %1440 = vmatpush2.xpose.msra.mxu0 0.0
        %1441 = vmatprep.subr.mxu0 0.0
        %1442 = vmatpush2.xpose.msra.mxu0 0.0
        %1443 = vmatprep.subr.mxu0 0.0
        %1444 = vmatpush2.xpose.msra.mxu0 0.0
        %1445 = vmatprep.subr.mxu0 0.0
        %1446 = vmatpush2.xpose.msra.mxu0 0.0
        %1447 = vmatprep.subr.mxu0 0.0
        %1448 = vmatpush2.xpose.msra.mxu0 0.0
        %1449 = vmatprep.subr.mxu0 0.0
        %1450 = vmatpush2.xpose.msra.mxu0 0.0
        %1451 = vmatprep.subr.mxu0 0.0
        %1452 = vmatpush2.xpose.msra.mxu0 0.0
        %1453 = vmatprep.subr.mxu0 0.0
        %1454 = vmatpush2.xpose.msra.mxu0 0.0
        %1455 = vmatprep.subr.mxu0 0.0
        %1456 = vmatpush2.xpose.msra.mxu0 0.0
        %1457 = vmatprep.subr.mxu0 0.0
        %1458 = vmatpush2.xpose.msra.mxu0 0.0
        %1459 = vmatprep.subr.mxu0 0.0
        %1460 = vmatpush2.xpose.msra.mxu0 0.0
        %1461 = vmatprep.subr.mxu0 0.0
        %1462 = vmatpush2.xpose.msra.mxu0 0.0
        %1463 = vmatprep.subr.mxu0 0.0
        %1464 = vmatpush2.xpose.msra.mxu0 0.0
        %1465 = vmatprep.mubr.f32.mxu0 0.0
        %1466 = vmatmul.mubr.f32.gmra.mxu0 %v1384
        %v1467 = vpop.f32.mrf.mxu0
        %v1468 = vadd.f32 0.0, %v1467
        %v1469 = vpop.f32.mrf.mxu0
        %1470 = vmatprep.mubr.f32.mxu0 0.0
        %1471 = vmatmul.mubr.f32.gmra.mxu0 %v1387
        %v1472 = vpop.f32.mrf.mxu0
        %v1473 = vadd.f32 0.0, %v1472
        %v1474 = vpop.f32.mrf.mxu0
        %1475 = vdwg.mxu0
        %v1476 = vmul.f32 %v1468, 0.35355338
        %v1477 = vmul.f32 %v1473, 0.35355338
        %v1478 = vsel %vm464, %v1476, -inf
        %1479 = vmax.xlane.f32.xlu0 %v1478
        %v1480 = vpop.xlane.xlu0 %1479
        %v1481 = vsel %vm464, %v1477, -inf
        %1482 = vmax.xlane.f32.xlu0 %v1481
        %v1483 = vpop.xlane.xlu0 %1482
        %v1484 = vsub.f32 %v1476, %v1480
        %v1485 = vsub.f32 %v1477, %v1483
        %v1486 = vmul.f32 %v1484, 1.442695
        %v1487 = vpow.pop %v1486
        %v1488 = vmul.f32 %v1485, 1.442695
        %v1489 = vpow.pop %v1488
        %v1491 = vsel %vm464, %v1487, 0
        %v1494 = vsel %vm464, %v1489, 0
        %1496 = vmatprep.subr.mxu0 0.0
        %1497 = vmatpush1.msra.mxu0 0.0
        %1498 = vmatprep.subr.mxu0 0.0
        %1499 = vmatpush1.msra.mxu0 0.0
        %1500 = vmatprep.subr.mxu0 0.0
        %1501 = vmatpush1.msra.mxu0 0.0
        %1502 = vmatprep.subr.mxu0 0.0
        %1503 = vmatpush1.msra.mxu0 0.0
        %1504 = vmatprep.subr.mxu0 0.0
        %1505 = vmatpush1.msra.mxu0 0.0
        %1506 = vmatprep.subr.mxu0 0.0
        %1507 = vmatpush1.msra.mxu0 0.0
        %1508 = vmatprep.subr.mxu0 0.0
        %1509 = vmatpush1.msra.mxu0 0.0
        %1510 = vmatprep.subr.mxu0 0.0
        %1511 = vmatpush1.msra.mxu0 0.0
        %1512 = vmatprep.subr.mxu0 0.0
        %1513 = vmatpush1.msra.mxu0 0.0
        %1514 = vmatprep.subr.mxu0 0.0
        %1515 = vmatpush1.msra.mxu0 0.0
        %1516 = vmatprep.subr.mxu0 0.0
        %1517 = vmatpush1.msra.mxu0 0.0
        %1518 = vmatprep.subr.mxu0 0.0
        %1519 = vmatpush1.msra.mxu0 0.0
        %1520 = vmatprep.subr.mxu0 0.0
        %1521 = vmatpush1.msra.mxu0 %v459
        %1522 = vmatprep.subr.mxu0 0.0
        %1523 = vmatpush1.msra.mxu0 %v458
        %1524 = vmatprep.subr.mxu0 0.0
        %1525 = vmatpush1.msra.mxu0 %v457
        %1526 = vmatprep.subr.mxu0 0.0
        %1527 = vmatpush1.msra.mxu0 %v456
        %1528 = vmatprep.subr.mxu0 0.0
        %1529 = vmatpush2.msra.mxu0 0.0
        %1530 = vmatprep.subr.mxu0 0.0
        %1531 = vmatpush2.msra.mxu0 0.0
        %1532 = vmatprep.subr.mxu0 0.0
        %1533 = vmatpush2.msra.mxu0 0.0
        %1534 = vmatprep.subr.mxu0 0.0
        %1535 = vmatpush2.msra.mxu0 0.0
        %1536 = vmatprep.subr.mxu0 0.0
        %1537 = vmatpush2.msra.mxu0 0.0
        %1538 = vmatprep.subr.mxu0 0.0
        %1539 = vmatpush2.msra.mxu0 0.0
        %1540 = vmatprep.subr.mxu0 0.0
        %1541 = vmatpush2.msra.mxu0 0.0
        %1542 = vmatprep.subr.mxu0 0.0
        %1543 = vmatpush2.msra.mxu0 0.0
        %1544 = vmatprep.subr.mxu0 0.0
        %1545 = vmatpush2.msra.mxu0 0.0
        %1546 = vmatprep.subr.mxu0 0.0
        %1547 = vmatpush2.msra.mxu0 0.0
        %1548 = vmatprep.subr.mxu0 0.0
        %1549 = vmatpush2.msra.mxu0 0.0
        %1550 = vmatprep.subr.mxu0 0.0
        %1551 = vmatpush2.msra.mxu0 0.0
        %1552 = vmatprep.subr.mxu0 0.0
        %1553 = vmatpush2.msra.mxu0 0.0
        %1554 = vmatprep.subr.mxu0 0.0
        %1555 = vmatpush2.msra.mxu0 0.0
        %1556 = vmatprep.subr.mxu0 0.0
        %1557 = vmatpush2.msra.mxu0 0.0
        %1558 = vmatprep.subr.mxu0 0.0
        %1559 = vmatpush2.msra.mxu0 0.0
        %1560 = vmatprep.mubr.f32.mxu0 0.0
        %1561 = vmatmul.mubr.f32.gmra.mxu0 %v1491
        %v1562 = vpop.f32.mrf.mxu0
        %v1563 = vadd.f32 0.0, %v1562
        %v1564 = vpop.f32.mrf.mxu0
        %1565 = vmatprep.mubr.f32.mxu0 0.0
        %1566 = vmatmul.mubr.f32.gmra.mxu0 %v1494
        %v1567 = vpop.f32.mrf.mxu0
        %v1568 = vadd.f32 0.0, %v1567
        %v1569 = vpop.f32.mrf.mxu0
        %1570 = vdwg.mxu0
        %v1571 = vmax.f32 %v1563, 1e-30
        %v1572 = vmax.f32 %v1568, 1e-30
        %v1573 = vrcp.pop %v1571
        %v1574 = vrcp.pop %v1572
        %v1575 = vmul.f32 %v1487, %v1573
        %v1576 = vmul.f32 %v1489, %v1574
        %v1578 = vsel %vm464, %v1575, 0
        %v1581 = vsel %vm464, %v1576, 0
        %1583 = vmatprep.subr.mxu0 0.0
        %1584 = vmatpush1.msra.mxu0 0.0
        %1585 = vmatprep.subr.mxu0 0.0
        %1586 = vmatpush1.msra.mxu0 0.0
        %1587 = vmatprep.subr.mxu0 0.0
        %1588 = vmatpush1.msra.mxu0 0.0
        %1589 = vmatprep.subr.mxu0 0.0
        %1590 = vmatpush1.msra.mxu0 0.0
        %1591 = vmatprep.subr.mxu0 0.0
        %1592 = vmatpush1.msra.mxu0 0.0
        %1593 = vmatprep.subr.mxu0 0.0
        %1594 = vmatpush1.msra.mxu0 0.0
        %1595 = vmatprep.subr.mxu0 0.0
        %1596 = vmatpush1.msra.mxu0 0.0
        %1597 = vmatprep.subr.mxu0 0.0
        %1598 = vmatpush1.msra.mxu0 0.0
        %1599 = vmatprep.subr.mxu0 0.0
        %1600 = vmatpush1.msra.mxu0 0.0
        %1601 = vmatprep.subr.mxu0 0.0
        %1602 = vmatpush1.msra.mxu0 0.0
        %1603 = vmatprep.subr.mxu0 0.0
        %1604 = vmatpush1.msra.mxu0 0.0
        %1605 = vmatprep.subr.mxu0 0.0
        %1606 = vmatpush1.msra.mxu0 0.0
        %1607 = vmatprep.subr.mxu0 0.0
        %1608 = vmatpush1.msra.mxu0 %v1382
        %1609 = vmatprep.subr.mxu0 0.0
        %1610 = vmatpush1.msra.mxu0 %v1381
        %1611 = vmatprep.subr.mxu0 0.0
        %1612 = vmatpush1.msra.mxu0 %v1380
        %1613 = vmatprep.subr.mxu0 0.0
        %1614 = vmatpush1.msra.mxu0 %v1379
        %1615 = vmatprep.subr.mxu0 0.0
        %1616 = vmatpush2.msra.mxu0 0.0
        %1617 = vmatprep.subr.mxu0 0.0
        %1618 = vmatpush2.msra.mxu0 0.0
        %1619 = vmatprep.subr.mxu0 0.0
        %1620 = vmatpush2.msra.mxu0 0.0
        %1621 = vmatprep.subr.mxu0 0.0
        %1622 = vmatpush2.msra.mxu0 0.0
        %1623 = vmatprep.subr.mxu0 0.0
        %1624 = vmatpush2.msra.mxu0 0.0
        %1625 = vmatprep.subr.mxu0 0.0
        %1626 = vmatpush2.msra.mxu0 0.0
        %1627 = vmatprep.subr.mxu0 0.0
        %1628 = vmatpush2.msra.mxu0 0.0
        %1629 = vmatprep.subr.mxu0 0.0
        %1630 = vmatpush2.msra.mxu0 0.0
        %1631 = vmatprep.subr.mxu0 0.0
        %1632 = vmatpush2.msra.mxu0 0.0
        %1633 = vmatprep.subr.mxu0 0.0
        %1634 = vmatpush2.msra.mxu0 0.0
        %1635 = vmatprep.subr.mxu0 0.0
        %1636 = vmatpush2.msra.mxu0 0.0
        %1637 = vmatprep.subr.mxu0 0.0
        %1638 = vmatpush2.msra.mxu0 0.0
        %1639 = vmatprep.subr.mxu0 0.0
        %1640 = vmatpush2.msra.mxu0 0.0
        %1641 = vmatprep.subr.mxu0 0.0
        %1642 = vmatpush2.msra.mxu0 0.0
        %1643 = vmatprep.subr.mxu0 0.0
        %1644 = vmatpush2.msra.mxu0 0.0
        %1645 = vmatprep.subr.mxu0 0.0
        %1646 = vmatpush2.msra.mxu0 0.0
        %1647 = vmatprep.mubr.f32.mxu0 0.0
        %1648 = vmatmul.mubr.f32.gmra.mxu0 %v1578
        %v1649 = vpop.f32.mrf.mxu0
        %v1650 = vadd.f32 0.0, %v1649
        %v1651 = vpop.f32.mrf.mxu0
        %1652 = vmatprep.mubr.f32.mxu0 0.0
        %1653 = vmatmul.mubr.f32.gmra.mxu0 %v1581
        %v1654 = vpop.f32.mrf.mxu0
        %v1655 = vadd.f32 0.0, %v1654
        %v1656 = vpop.f32.mrf.mxu0
        %1657 = vdwg.mxu0
        %v1658 = vlaneseq
        %v1659 = vshrl.u32 %v1658, 7
        %v1660 = vsub.s32 0, %v1659
        %v1661 = vrot.slane %v1355, %v1660
        %v1663 = vsel %vm464, %v1650, 0
        %v1666 = vsel %vm464, %v1655, 0
        %1668 = vmatprep.subr.mxu0 0.0
        %1669 = vmatpush1.msra.mxu0 0.0
        %1670 = vmatprep.subr.mxu0 0.0
        %1671 = vmatpush1.msra.mxu0 0.0
        %1672 = vmatprep.subr.mxu0 0.0
        %1673 = vmatpush1.msra.mxu0 0.0
        %1674 = vmatprep.subr.mxu0 0.0
        %1675 = vmatpush1.msra.mxu0 0.0
        %1676 = vmatprep.subr.mxu0 0.0
        %1677 = vmatpush1.msra.mxu0 0.0
        %1678 = vmatprep.subr.mxu0 0.0
        %1679 = vmatpush1.msra.mxu0 0.0
        %1680 = vmatprep.subr.mxu0 0.0
        %1681 = vmatpush1.msra.mxu0 0.0
        %1682 = vmatprep.subr.mxu0 0.0
        %1683 = vmatpush1.msra.mxu0 0.0
        %1684 = vmatprep.subr.mxu0 0.0
        %1685 = vmatpush1.msra.mxu0 0.0
        %1686 = vmatprep.subr.mxu0 0.0
        %1687 = vmatpush1.msra.mxu0 0.0
        %1688 = vmatprep.subr.mxu0 0.0
        %1689 = vmatpush1.msra.mxu0 0.0
        %1690 = vmatprep.subr.mxu0 0.0
        %1691 = vmatpush1.msra.mxu0 0.0
        %1692 = vmatprep.subr.mxu0 0.0
        %1693 = vmatpush1.msra.mxu0 %v1354
        %1694 = vmatprep.subr.mxu0 0.0
        %1695 = vmatpush1.msra.mxu0 %v1353
        %1696 = vmatprep.subr.mxu0 0.0
        %1697 = vmatpush1.msra.mxu0 %v1352
        %1698 = vmatprep.subr.mxu0 0.0
        %1699 = vmatpush1.msra.mxu0 %v1351
        %1700 = vmatprep.subr.mxu0 0.0
        %1701 = vmatpush2.msra.mxu0 0.0
        %1702 = vmatprep.subr.mxu0 0.0
        %1703 = vmatpush2.msra.mxu0 0.0
        %1704 = vmatprep.subr.mxu0 0.0
        %1705 = vmatpush2.msra.mxu0 0.0
        %1706 = vmatprep.subr.mxu0 0.0
        %1707 = vmatpush2.msra.mxu0 0.0
        %1708 = vmatprep.subr.mxu0 0.0
        %1709 = vmatpush2.msra.mxu0 0.0
        %1710 = vmatprep.subr.mxu0 0.0
        %1711 = vmatpush2.msra.mxu0 0.0
        %1712 = vmatprep.subr.mxu0 0.0
        %1713 = vmatpush2.msra.mxu0 0.0
        %1714 = vmatprep.subr.mxu0 0.0
        %1715 = vmatpush2.msra.mxu0 0.0
        %1716 = vmatprep.subr.mxu0 0.0
        %1717 = vmatpush2.msra.mxu0 0.0
        %1718 = vmatprep.subr.mxu0 0.0
        %1719 = vmatpush2.msra.mxu0 0.0
        %1720 = vmatprep.subr.mxu0 0.0
        %1721 = vmatpush2.msra.mxu0 0.0
        %1722 = vmatprep.subr.mxu0 0.0
        %1723 = vmatpush2.msra.mxu0 0.0
        %1724 = vmatprep.subr.mxu0 0.0
        %1725 = vmatpush2.msra.mxu0 0.0
        %1726 = vmatprep.subr.mxu0 0.0
        %1727 = vmatpush2.msra.mxu0 0.0
        %1728 = vmatprep.subr.mxu0 0.0
        %1729 = vmatpush2.msra.mxu0 0.0
        %1730 = vmatprep.subr.mxu0 0.0
        %1731 = vmatpush2.msra.mxu0 0.0
        %1732 = vmatprep.mubr.f32.mxu0 0.0
        %1733 = vmatmul.mubr.f32.gmra.mxu0 %v1663
        %v1734 = vpop.f32.mrf.mxu0
        %v1735 = vadd.f32 %v1661, %v1734
        %v1736 = vpop.f32.mrf.mxu0
        %1737 = vmatprep.mubr.f32.mxu0 0.0
        %1738 = vmatmul.mubr.f32.gmra.mxu0 %v1666
        %v1739 = vpop.f32.mrf.mxu0
        %v1740 = vadd.f32 %v1661, %v1739
        %v1741 = vpop.f32.mrf.mxu0
        %1742 = vdwg.mxu0
        %v1743 = vadd.f32 %v1120, %v1735
        %v1744 = vadd.f32 %v1121, %v1740
        %v1745 = vld [vmem:[%s258 + $0x127] sm:$0x1]
        %v1746 = vmul.f32 %v1743, %v1743
        %v1747 = vmul.f32 %v1744, %v1744
        %v1748 = vsel %vm464, %v1746, 0.0
        %1749 = vadd.xlane.f32.xlu0 %v1748
        %v1750 = vpop.xlane.xlu0 %1749
        %v1751 = vsel %vm464, %v1747, 0.0
        %1752 = vadd.xlane.f32.xlu0 %v1751
        %v1753 = vpop.xlane.xlu0 %1752
        %v1754 = vmul.f32 %v1750, %v471
        %v1755 = vmul.f32 %v1753, %v471
        %v1756 = vadd.f32 %v1754, 1.1920929e-07
        %v1757 = vadd.f32 %v1755, 1.1920929e-07
        %v1758 = vrsqrt.pop %v1756
        %v1759 = vrsqrt.pop %v1757
        %v1760 = vmul.f32 %v1743, %v1758
        %v1761 = vmul.f32 %v1744, %v1759
        %v1762 = vlaneseq
        %v1763 = vshrl.u32 %v1762, 7
        %v1764 = vsub.s32 0, %v1763
        %v1765 = vrot.slane %v1745, %v1764
        %v1766 = vmul.f32 %v1760, %v1765
        %v1767 = vmul.f32 %v1761, %v1765
        %v1768 = vld [vmem:[%s258 + $0xa0] sm:$0xff]
        %v1769 = vld [vmem:[%s258 + $0xa8] sm:$0xff]
        %v1770 = vld [vmem:[%s258 + $0xb0] sm:$0xff]
        %v1771 = vld [vmem:[%s258 + $0xb8] sm:$0xff]
        %v1772 = vld [vmem:[%s258 + $0x128] sm:$0x1]
        %v1773 = vlaneseq
        %v1774 = vshrl.u32 %v1773, 7
        %v1775 = vsub.s32 0, %v1774
        %v1776 = vrot.slane %v1772, %v1775
        %v1778 = vsel %vm464, %v1766, 0
        %v1781 = vsel %vm464, %v1767, 0
        %1783 = vmatprep.subr.mxu0 0.0
        %1784 = vmatpush1.msra.mxu0 0.0
        %1785 = vmatprep.subr.mxu0 0.0
        %1786 = vmatpush1.msra.mxu0 0.0
        %1787 = vmatprep.subr.mxu0 0.0
        %1788 = vmatpush1.msra.mxu0 0.0
        %1789 = vmatprep.subr.mxu0 0.0
        %1790 = vmatpush1.msra.mxu0 0.0
        %1791 = vmatprep.subr.mxu0 0.0
        %1792 = vmatpush1.msra.mxu0 0.0
        %1793 = vmatprep.subr.mxu0 0.0
        %1794 = vmatpush1.msra.mxu0 0.0
        %1795 = vmatprep.subr.mxu0 0.0
        %1796 = vmatpush1.msra.mxu0 0.0
        %1797 = vmatprep.subr.mxu0 0.0
        %1798 = vmatpush1.msra.mxu0 0.0
        %1799 = vmatprep.subr.mxu0 0.0
        %1800 = vmatpush1.msra.mxu0 0.0
        %1801 = vmatprep.subr.mxu0 0.0
        %1802 = vmatpush1.msra.mxu0 0.0
        %1803 = vmatprep.subr.mxu0 0.0
        %1804 = vmatpush1.msra.mxu0 0.0
        %1805 = vmatprep.subr.mxu0 0.0
        %1806 = vmatpush1.msra.mxu0 0.0
        %1807 = vmatprep.subr.mxu0 0.0
        %1808 = vmatpush1.msra.mxu0 %v1771
        %1809 = vmatprep.subr.mxu0 0.0
        %1810 = vmatpush1.msra.mxu0 %v1770
        %1811 = vmatprep.subr.mxu0 0.0
        %1812 = vmatpush1.msra.mxu0 %v1769
        %1813 = vmatprep.subr.mxu0 0.0
        %1814 = vmatpush1.msra.mxu0 %v1768
        %1815 = vmatprep.subr.mxu0 0.0
        %1816 = vmatpush2.msra.mxu0 0.0
        %1817 = vmatprep.subr.mxu0 0.0
        %1818 = vmatpush2.msra.mxu0 0.0
        %1819 = vmatprep.subr.mxu0 0.0
        %1820 = vmatpush2.msra.mxu0 0.0
        %1821 = vmatprep.subr.mxu0 0.0
        %1822 = vmatpush2.msra.mxu0 0.0
        %1823 = vmatprep.subr.mxu0 0.0
        %1824 = vmatpush2.msra.mxu0 0.0
        %1825 = vmatprep.subr.mxu0 0.0
        %1826 = vmatpush2.msra.mxu0 0.0
        %1827 = vmatprep.subr.mxu0 0.0
        %1828 = vmatpush2.msra.mxu0 0.0
        %1829 = vmatprep.subr.mxu0 0.0
        %1830 = vmatpush2.msra.mxu0 0.0
        %1831 = vmatprep.subr.mxu0 0.0
        %1832 = vmatpush2.msra.mxu0 0.0
        %1833 = vmatprep.subr.mxu0 0.0
        %1834 = vmatpush2.msra.mxu0 0.0
        %1835 = vmatprep.subr.mxu0 0.0
        %1836 = vmatpush2.msra.mxu0 0.0
        %1837 = vmatprep.subr.mxu0 0.0
        %1838 = vmatpush2.msra.mxu0 0.0
        %1839 = vmatprep.subr.mxu0 0.0
        %1840 = vmatpush2.msra.mxu0 0.0
        %1841 = vmatprep.subr.mxu0 0.0
        %1842 = vmatpush2.msra.mxu0 0.0
        %1843 = vmatprep.subr.mxu0 0.0
        %1844 = vmatpush2.msra.mxu0 0.0
        %1845 = vmatprep.subr.mxu0 0.0
        %1846 = vmatpush2.msra.mxu0 0.0
        %1847 = vmatprep.mubr.f32.mxu0 0.0
        %1848 = vmatmul.mubr.f32.gmra.mxu0 %v1778
        %v1849 = vpop.f32.mrf.mxu0
        %v1850 = vadd.f32 %v1776, %v1849
        %v1851 = vpop.f32.mrf.mxu0
        %1852 = vmatprep.mubr.f32.mxu0 0.0
        %1853 = vmatmul.mubr.f32.gmra.mxu0 %v1781
        %v1854 = vpop.f32.mrf.mxu0
        %v1855 = vadd.f32 %v1776, %v1854
        %v1856 = vpop.f32.mrf.mxu0
        %1857 = vdwg.mxu0
        %v1858 = vld [vmem:[%s258 + $0xc0] sm:$0xff]
        %v1859 = vld [vmem:[%s258 + $0xc8] sm:$0xff]
        %v1860 = vld [vmem:[%s258 + $0xd0] sm:$0xff]
        %v1861 = vld [vmem:[%s258 + $0xd8] sm:$0xff]
        %v1862 = vld [vmem:[%s258 + $0x129] sm:$0x1]
        %v1863 = vlaneseq
        %v1864 = vshrl.u32 %v1863, 7
        %v1865 = vsub.s32 0, %v1864
        %v1866 = vrot.slane %v1862, %v1865
        %1867 = vmatprep.subr.mxu0 0.0
        %1868 = vmatpush1.msra.mxu0 0.0
        %1869 = vmatprep.subr.mxu0 0.0
        %1870 = vmatpush1.msra.mxu0 0.0
        %1871 = vmatprep.subr.mxu0 0.0
        %1872 = vmatpush1.msra.mxu0 0.0
        %1873 = vmatprep.subr.mxu0 0.0
        %1874 = vmatpush1.msra.mxu0 0.0
        %1875 = vmatprep.subr.mxu0 0.0
        %1876 = vmatpush1.msra.mxu0 0.0
        %1877 = vmatprep.subr.mxu0 0.0
        %1878 = vmatpush1.msra.mxu0 0.0
        %1879 = vmatprep.subr.mxu0 0.0
        %1880 = vmatpush1.msra.mxu0 0.0
        %1881 = vmatprep.subr.mxu0 0.0
        %1882 = vmatpush1.msra.mxu0 0.0
        %1883 = vmatprep.subr.mxu0 0.0
        %1884 = vmatpush1.msra.mxu0 0.0
        %1885 = vmatprep.subr.mxu0 0.0
        %1886 = vmatpush1.msra.mxu0 0.0
        %1887 = vmatprep.subr.mxu0 0.0
        %1888 = vmatpush1.msra.mxu0 0.0
        %1889 = vmatprep.subr.mxu0 0.0
        %1890 = vmatpush1.msra.mxu0 0.0
        %1891 = vmatprep.subr.mxu0 0.0
        %1892 = vmatpush1.msra.mxu0 %v1861
        %1893 = vmatprep.subr.mxu0 0.0
        %1894 = vmatpush1.msra.mxu0 %v1860
        %1895 = vmatprep.subr.mxu0 0.0
        %1896 = vmatpush1.msra.mxu0 %v1859
        %1897 = vmatprep.subr.mxu0 0.0
        %1898 = vmatpush1.msra.mxu0 %v1858
        %1899 = vmatprep.subr.mxu0 0.0
        %1900 = vmatpush2.msra.mxu0 0.0
        %1901 = vmatprep.subr.mxu0 0.0
        %1902 = vmatpush2.msra.mxu0 0.0
        %1903 = vmatprep.subr.mxu0 0.0
        %1904 = vmatpush2.msra.mxu0 0.0
        %1905 = vmatprep.subr.mxu0 0.0
        %1906 = vmatpush2.msra.mxu0 0.0
        %1907 = vmatprep.subr.mxu0 0.0
        %1908 = vmatpush2.msra.mxu0 0.0
        %1909 = vmatprep.subr.mxu0 0.0
        %1910 = vmatpush2.msra.mxu0 0.0
        %1911 = vmatprep.subr.mxu0 0.0
        %1912 = vmatpush2.msra.mxu0 0.0
        %1913 = vmatprep.subr.mxu0 0.0
        %1914 = vmatpush2.msra.mxu0 0.0
        %1915 = vmatprep.subr.mxu0 0.0
        %1916 = vmatpush2.msra.mxu0 0.0
        %1917 = vmatprep.subr.mxu0 0.0
        %1918 = vmatpush2.msra.mxu0 0.0
        %1919 = vmatprep.subr.mxu0 0.0
        %1920 = vmatpush2.msra.mxu0 0.0
        %1921 = vmatprep.subr.mxu0 0.0
        %1922 = vmatpush2.msra.mxu0 0.0
        %1923 = vmatprep.subr.mxu0 0.0
        %1924 = vmatpush2.msra.mxu0 0.0
        %1925 = vmatprep.subr.mxu0 0.0
        %1926 = vmatpush2.msra.mxu0 0.0
        %1927 = vmatprep.subr.mxu0 0.0
        %1928 = vmatpush2.msra.mxu0 0.0
        %1929 = vmatprep.subr.mxu0 0.0
        %1930 = vmatpush2.msra.mxu0 0.0
        %1931 = vmatprep.mubr.f32.mxu0 0.0
        %1932 = vmatmul.mubr.f32.gmra.mxu0 %v1778
        %v1933 = vpop.f32.mrf.mxu0
        %v1934 = vadd.f32 %v1866, %v1933
        %v1935 = vpop.f32.mrf.mxu0
        %1936 = vmatprep.mubr.f32.mxu0 0.0
        %1937 = vmatmul.mubr.f32.gmra.mxu0 %v1781
        %v1938 = vpop.f32.mrf.mxu0
        %v1939 = vadd.f32 %v1866, %v1938
        %v1940 = vpop.f32.mrf.mxu0
        %1941 = vdwg.mxu0
        %v1942 = vmul.f32 %v1850, %v1934
        %v1943 = vmul.f32 %v1855, %v1939
        %v1944 = vxor.u32 %v1934, 2147483648
        %v1945 = vxor.u32 %v1939, 2147483648
        %v1946 = vmul.f32 %v1944, 1.442695
        %v1947 = vpow.pop %v1946
        %v1948 = vmul.f32 %v1945, 1.442695
        %v1949 = vpow.pop %v1948
        %v1950 = vadd.f32 %v1947, 1.0
        %v1951 = vadd.f32 %v1949, 1.0
        %v1952 = vrcp.pop %v1950
        %v1953 = vmul.f32 1.0, %v1952
        %v1954 = vrcp.pop %v1951
        %v1955 = vmul.f32 1.0, %v1954
        %v1956 = vmul.f32 %v1942, %v1953
        %v1957 = vmul.f32 %v1943, %v1955
        %v1958 = vld [vmem:[%s258 + $0xe0] sm:$0xff]
        %v1959 = vld [vmem:[%s258 + $0xe8] sm:$0xff]
        %v1960 = vld [vmem:[%s258 + $0xf0] sm:$0xff]
        %v1961 = vld [vmem:[%s258 + $0xf8] sm:$0xff]
        %v1962 = vld [vmem:[%s258 + $0x100] sm:$0xff]
        %v1963 = vld [vmem:[%s258 + $0x108] sm:$0xff]
        %v1964 = vld [vmem:[%s258 + $0x110] sm:$0xff]
        %v1965 = vld [vmem:[%s258 + $0x118] sm:$0xff]
        %v1967 = vsel %vm852, %v1956, 0
        %v1970 = vsel %vm852, %v1957, 0
        %1972 = vmatprep.subr.mxu0 0.0
        %1973 = vmatpush1.msra.mxu0 0.0
        %1974 = vmatprep.subr.mxu0 0.0
        %1975 = vmatpush1.msra.mxu0 0.0
        %1976 = vmatprep.subr.mxu0 0.0
        %1977 = vmatpush1.msra.mxu0 0.0
        %1978 = vmatprep.subr.mxu0 0.0
        %1979 = vmatpush1.msra.mxu0 0.0
        %1980 = vmatprep.subr.mxu0 0.0
        %1981 = vmatpush1.msra.mxu0 0.0
        %1982 = vmatprep.subr.mxu0 0.0
        %1983 = vmatpush1.msra.mxu0 0.0
        %1984 = vmatprep.subr.mxu0 0.0
        %1985 = vmatpush1.msra.mxu0 0.0
        %1986 = vmatprep.subr.mxu0 0.0
        %1987 = vmatpush1.msra.mxu0 0.0
        %1988 = vmatprep.subr.mxu0 0.0
        %1989 = vmatpush1.msra.mxu0 %v1965
        %1990 = vmatprep.subr.mxu0 0.0
        %1991 = vmatpush1.msra.mxu0 %v1964
        %1992 = vmatprep.subr.mxu0 0.0
        %1993 = vmatpush1.msra.mxu0 %v1963
        %1994 = vmatprep.subr.mxu0 0.0
        %1995 = vmatpush1.msra.mxu0 %v1962
        %1996 = vmatprep.subr.mxu0 0.0
        %1997 = vmatpush1.msra.mxu0 %v1961
        %1998 = vmatprep.subr.mxu0 0.0
        %1999 = vmatpush1.msra.mxu0 %v1960
        %2000 = vmatprep.subr.mxu0 0.0
        %2001 = vmatpush1.msra.mxu0 %v1959
        %2002 = vmatprep.subr.mxu0 0.0
        %2003 = vmatpush1.msra.mxu0 %v1958
        %2004 = vmatprep.subr.mxu0 0.0
        %2005 = vmatpush2.msra.mxu0 0.0
        %2006 = vmatprep.subr.mxu0 0.0
        %2007 = vmatpush2.msra.mxu0 0.0
        %2008 = vmatprep.subr.mxu0 0.0
        %2009 = vmatpush2.msra.mxu0 0.0
        %2010 = vmatprep.subr.mxu0 0.0
        %2011 = vmatpush2.msra.mxu0 0.0
        %2012 = vmatprep.subr.mxu0 0.0
        %2013 = vmatpush2.msra.mxu0 0.0
        %2014 = vmatprep.subr.mxu0 0.0
        %2015 = vmatpush2.msra.mxu0 0.0
        %2016 = vmatprep.subr.mxu0 0.0
        %2017 = vmatpush2.msra.mxu0 0.0
        %2018 = vmatprep.subr.mxu0 0.0
        %2019 = vmatpush2.msra.mxu0 0.0
        %2020 = vmatprep.subr.mxu0 0.0
        %2021 = vmatpush2.msra.mxu0 0.0
        %2022 = vmatprep.subr.mxu0 0.0
        %2023 = vmatpush2.msra.mxu0 0.0
        %2024 = vmatprep.subr.mxu0 0.0
        %2025 = vmatpush2.msra.mxu0 0.0
        %2026 = vmatprep.subr.mxu0 0.0
        %2027 = vmatpush2.msra.mxu0 0.0
        %2028 = vmatprep.subr.mxu0 0.0
        %2029 = vmatpush2.msra.mxu0 0.0
        %2030 = vmatprep.subr.mxu0 0.0
        %2031 = vmatpush2.msra.mxu0 0.0
        %2032 = vmatprep.subr.mxu0 0.0
        %2033 = vmatpush2.msra.mxu0 0.0
        %2034 = vmatprep.subr.mxu0 0.0
        %2035 = vmatpush2.msra.mxu0 0.0
        %2036 = vmatprep.mubr.f32.mxu0 0.0
        %2037 = vmatmul.mubr.f32.gmra.mxu0 %v1967
        %v2038 = vpop.f32.mrf.mxu0
        %v2039 = vadd.f32 0.0, %v2038
        %v2040 = vpop.f32.mrf.mxu0
        %2041 = vmatprep.mubr.f32.mxu0 0.0
        %2042 = vmatmul.mubr.f32.gmra.mxu0 %v1970
        %v2043 = vpop.f32.mrf.mxu0
        %v2044 = vadd.f32 0.0, %v2043
        %v2045 = vpop.f32.mrf.mxu0
        %2046 = vdwg.mxu0
        %v2047 = vadd.f32 %v1743, %v2039
        %v2048 = vadd.f32 %v1744, %v2044
        %v2049 = vld [vmem:[%s258 + $0x12a] sm:$0x1]
        %v2050 = vlaneseq
        %v2051 = vshrl.u32 %v2050, 7
        %v2052 = vsub.s32 0, %v2051
        %v2053 = vrot.slane %v2049, %v2052
        %v2054 = vadd.f32 %v2047, %v2053
        %v2055 = vadd.f32 %v2048, %v2053
        %2056 = vst.msk [vmem:[#allocation2] sm:$0xff] %vm464, %v2054
        %2057 = vst.msk [vmem:[#allocation2 + $0x8] sm:$0xff] %vm464, %v2055
        %2058 = vst.msk [vmem:[%s304] sm:$0xff] %vm464, %v2054
        %2059 = vst.msk [vmem:[%s304 + $0x8] sm:$0xff] %vm464, %v2055
        %s2060 = smul.u32 2, %s21
        %p2061 = scmp.lt.s32.totalorder %s2060, 3
        %s2062 = scalar_select %p2061, %s2060, 3
        %s2063 = smul.addr %s2062, 8
        %s2064 = scalar_lea.vmem %s6, %s2063
        // Predicated region
        $region57: #{rxt_forward.1} parent=43 // pred_check
          %p2065 = pneg %p175
        $region58: #{rxt_forward.1} parent=43 // pred_check_branch
          %2067 = sbr.rel (%p2065) target = $region60
        $region59: #{rxt_forward.1} parent=43 // pred_region
          %s2068 = smul.u32 2, %s21
        $region60: #{rxt_forward.1} parent=43 // pred_fallthru
          _
      $region44: #{rxt_forward.1} parent=5 // pred_fallthru
        _
      %p2069 = scmp.le.s32.totalorder 2, %s16
      // Predicated region
      $region61: #{rxt_forward.1} parent=5 // pred_check
        %p2070 = pneg %p2069
      $region62: #{rxt_forward.1} parent=5 // pred_check_branch
        %2072 = sbr.rel (%p2070) target = $region64
      $region63: #{rxt_forward.1} parent=5 // pred_region
        %s2073 = ssub.s32 %s16, 2
        // Predicated region
        $region65: #{rxt_forward.1} parent=63 // pred_check
          %p2074 = pneg %p181
        $region66: #{rxt_forward.1} parent=63 // pred_check_branch
          %2076 = sbr.rel (%p2074) target = $region68
        $region67: #{rxt_forward.1} parent=63 // pred_region
          %s2077 = smul.u32 2, %s22
          %p2078 = scmp.lt.s32.totalorder %s2077, 3
          %s2079 = scalar_select %p2078, %s2077, 3
          %s2080 = smul.addr %s2079, 8
          %s2081 = scalar_lea.vmem %s6, %s2080
        $region68: #{rxt_forward.1} parent=63 // pred_fallthru
          _
      $region64: #{rxt_forward.1} parent=5 // pred_fallthru
        _
    $region6: #{rxt_forward.1} parent=1 // loop_footer
      %s20 = sadd.s32 1, %s16
    $region7: #{rxt_forward.1} parent=1 // loop_footer_branch
      %15 = sbr.rel target = $region3
    $region8: #{rxt_forward.1} parent=1 // loop_exit
      _
    %2082 = vsyncpa [#allocation4], 1
    %s2083 = scalar_lea.sflag [#allocation4], 1
    %2084 = vsyncpa %s2083, 1
    %2085 = vsyncpa [#allocation6], 1

</llo_original>
